<compile_context>
chip_gen: v7x
topology: tpu7x:2x2x1
jax: 0.10.0
libtpu: 0.0.40
codegen_flags: <defaults>
</compile_context>

<pallas_src>
import functools

import jax
import jax.numpy as jnp
from jax.experimental import pallas as pl
from jax.experimental.pallas import tpu as pltpu


def actor_kernel(x_ref,
                 w1_ref, b1_ref, w2_ref, b2_ref, w3_ref, b3_ref,
                 w4_ref, b4_ref, w5_ref, b5_ref, w6_ref, b6_ref,
                 out_ref, *, max_action):
    """Fused MLP forward for one batch row-block. All refs live in VMEM."""

    def dense(x_f32, w_ref, b_ref):
        # bf16 x bf16 on the MXU, f32 accumulation; bias add in f32 on the VPU.
        return jnp.dot(x_f32.astype(jnp.bfloat16), w_ref[...],
                       preferred_element_type=jnp.float32) + b_ref[...]

    def dense_relu(x_f32, w_ref, b_ref):
        return jnp.maximum(dense(x_f32, w_ref, b_ref), 0.0)

    a = dense_relu(x_ref[...], w1_ref, b1_ref)      # l1 + relu
    a = dense_relu(a, w2_ref, b2_ref)               # l2 + relu
    a = dense_relu(a, w3_ref, b3_ref)               # l3 + relu
    a = dense_relu(a, w4_ref, b4_ref)               # l4 + relu (1st time)
    a = dense_relu(a, w4_ref, b4_ref)               # l4 + relu (2nd time)
    a = dense_relu(a, w4_ref, b4_ref)               # l4 + relu (3rd time)
    a = dense_relu(a, w5_ref, b5_ref)               # l5 + relu
    y = dense(a, w6_ref, b6_ref)                    # l6 (f32)
    out_ref[...] = (max_action * jnp.tanh(y)).astype(out_ref.dtype)


def init_actor_params(key, state_dim, action_dim):
    """PyTorch-style (uniform +-1/sqrt(fan_in)) init; weights stored in bf16."""
    layer_dims = [
        (state_dim, 256),   # l1
        (256, 256),         # l2
        (256, 512),         # l3
        (512, 512),         # l4
        (512, 256),         # l5
        (256, action_dim),  # l6
    ]
    params = {}
    for i, (fan_in, fan_out) in enumerate(layer_dims, start=1):
        key, kw, kb = jax.random.split(key, 3)
        bound = 1.0 / float(fan_in) ** 0.5
        w = jax.random.uniform(kw, (fan_in, fan_out), jnp.float32,
                               minval=-bound, maxval=bound)
        params[f"w{i}"] = w.astype(jnp.bfloat16)        # halves weight DMA bytes
        # bias kept 2D (1, fan_out) f32 so the add/ReLU run in f32 on the VPU
        params[f"b{i}"] = jax.random.uniform(kb, (1, fan_out), jnp.float32,
                                             minval=-bound, maxval=bound)
    return params


def _round_up(x, m):
    return (x + m - 1) // m * m


def actor_forward(state, params, max_action, *, max_block_m=256):
    batch, state_dim = state.shape
    action_dim = params["w6"].shape[1]

    # Pad batch to a sublane-aligned row block; tile batch across the grid so
    # v7x's two TensorCores split large batches ("parallel" axis).
    padded_batch = _round_up(batch, 8)
    block_m = min(max_block_m, padded_batch)
    padded_batch = _round_up(padded_batch, block_m)
    if padded_batch != batch:
        state = jnp.pad(state, ((0, padded_batch - batch), (0, 0)))
    grid = (padded_batch // block_m,)

    weight_args = (
        params["w1"], params["b1"],
        params["w2"], params["b2"],
        params["w3"], params["b3"],
        params["w4"], params["b4"],
        params["w5"], params["b5"],
        params["w6"], params["b6"],
    )

    # Whole-array weight blocks with a constant index_map: weights stay resident
    # in VMEM across batch-grid steps (no per-step re-DMA).
    weight_specs = [
        pl.BlockSpec(w.shape, lambda i: (0, 0)) for w in weight_args
    ]

    kernel = functools.partial(actor_kernel, max_action=float(max_action))
    out = pl.pallas_call(
        kernel,
        out_shape=jax.ShapeDtypeStruct((padded_batch, action_dim), jnp.float32),
        grid=grid,
        in_specs=[pl.BlockSpec((block_m, state_dim), lambda i: (i, 0))]
                 + weight_specs,
        out_specs=pl.BlockSpec((block_m, action_dim), lambda i: (i, 0)),
        compiler_params=pltpu.CompilerParams(
            dimension_semantics=("parallel",)),
    )(state, *weight_args)
    return out[:batch]


def actor_reference(state, params, max_action):
    """Pure-JAX reference mirroring the kernel's bf16-weight math (l4 applied 3x)."""
    def dense(x, w, b):
        return jnp.dot(x.astype(jnp.bfloat16), w,
                       preferred_element_type=jnp.float32) + b

    def dense_relu(x, w, b):
        return jnp.maximum(dense(x, w, b), 0.0)

    a = dense_relu(state, params["w1"], params["b1"])
    a = dense_relu(a, params["w2"], params["b2"])
    a = dense_relu(a, params["w3"], params["b3"])
    a = dense_relu(a, params["w4"], params["b4"])
    a = dense_relu(a, params["w4"], params["b4"])
    a = dense_relu(a, params["w4"], params["b4"])
    a = dense_relu(a, params["w5"], params["b5"])
    return max_action * jnp.tanh(dense(a, params["w6"], params["b6"]))


if __name__ == "__main__":
    batch = 8
    state_dim = 16
    action_dim = 8
    max_action = 2.0

    key = jax.random.PRNGKey(0)
    key, k_state = jax.random.split(key)
    state = jax.random.normal(k_state, (batch, state_dim), dtype=jnp.float32)
    params = init_actor_params(key, state_dim, action_dim)

    out = actor_forward(state, params, max_action)
    out = jax.block_until_ready(out)

    ref = actor_reference(state, params, max_action)
    assert out.shape == (batch, action_dim)
    # bf16 weights/operands -> loosened tolerance (output bounded by tanh*2)
    assert jnp.allclose(out, ref, atol=2e-2, rtol=2e-2)

    print("KERNEL_OK")
</pallas_src>

<mosaic_0001>
module attributes {stable_mosaic.version = 11 : i64} {
  func.func @actor_kernel(%arg0: i32, %arg1: memref<8x16xf32, #tpu.memory_space<vmem>>, %arg2: memref<16x256xbf16, #tpu.memory_space<vmem>>, %arg3: memref<1x256xf32, #tpu.memory_space<vmem>>, %arg4: memref<256x256xbf16, #tpu.memory_space<vmem>>, %arg5: memref<1x256xf32, #tpu.memory_space<vmem>>, %arg6: memref<256x512xbf16, #tpu.memory_space<vmem>>, %arg7: memref<1x512xf32, #tpu.memory_space<vmem>>, %arg8: memref<512x512xbf16, #tpu.memory_space<vmem>>, %arg9: memref<1x512xf32, #tpu.memory_space<vmem>>, %arg10: memref<512x256xbf16, #tpu.memory_space<vmem>>, %arg11: memref<1x256xf32, #tpu.memory_space<vmem>>, %arg12: memref<256x8xbf16, #tpu.memory_space<vmem>>, %arg13: memref<1x8xf32, #tpu.memory_space<vmem>>, %arg14: memref<8x8xf32, #tpu.memory_space<vmem>>) attributes {dimension_semantics = [#tpu.dimension_semantics<parallel>], iteration_bounds = array<i64: 1>, scalar_prefetch = 0 : i64, scratch_operands = 0 : i64, tpu.core_type = #tpu.core_type<tc>, window_params = [{transform_indices = @transform_0, window_bounds = array<i64: 8, 16>}, {pipeline_mode = #tpu.pipeline_mode<synchronous>, transform_indices = @transform_1, window_bounds = array<i64: 16, 256>}, {pipeline_mode = #tpu.pipeline_mode<synchronous>, transform_indices = @transform_2, window_bounds = array<i64: 1, 256>}, {pipeline_mode = #tpu.pipeline_mode<synchronous>, transform_indices = @transform_3, window_bounds = array<i64: 256, 256>}, {pipeline_mode = #tpu.pipeline_mode<synchronous>, transform_indices = @transform_4, window_bounds = array<i64: 1, 256>}, {pipeline_mode = #tpu.pipeline_mode<synchronous>, transform_indices = @transform_5, window_bounds = array<i64: 256, 512>}, {pipeline_mode = #tpu.pipeline_mode<synchronous>, transform_indices = @transform_6, window_bounds = array<i64: 1, 512>}, {pipeline_mode = #tpu.pipeline_mode<synchronous>, transform_indices = @transform_7, window_bounds = array<i64: 512, 512>}, {pipeline_mode = #tpu.pipeline_mode<synchronous>, transform_indices = @transform_8, window_bounds = array<i64: 1, 512>}, {pipeline_mode = #tpu.pipeline_mode<synchronous>, transform_indices = @transform_9, window_bounds = array<i64: 512, 256>}, {pipeline_mode = #tpu.pipeline_mode<synchronous>, transform_indices = @transform_10, window_bounds = array<i64: 1, 256>}, {pipeline_mode = #tpu.pipeline_mode<synchronous>, transform_indices = @transform_11, window_bounds = array<i64: 256, 8>}, {pipeline_mode = #tpu.pipeline_mode<synchronous>, transform_indices = @transform_12, window_bounds = array<i64: 1, 8>}, {transform_indices = @transform_13, window_bounds = array<i64: 8, 8>}]} {
    %c0 = arith.constant 0 : index
    %c0_0 = arith.constant 0 : index
    %0 = vector.load %arg1[%c0, %c0_0] : memref<8x16xf32, #tpu.memory_space<vmem>>, vector<8x16xf32>
    %1 = arith.truncf %0 : vector<8x16xf32> to vector<8x16xbf16>
    %c0_1 = arith.constant 0 : index
    %c0_2 = arith.constant 0 : index
    %2 = vector.load %arg2[%c0_1, %c0_2] : memref<16x256xbf16, #tpu.memory_space<vmem>>, vector<16x256xbf16>
    %cst = arith.constant dense<0.000000e+00> : vector<8x256xf32>
    %3 = tpu.matmul %1, %2, %cst {dimension_numbers = #tpu.dot_dimension_numbers<[1], [0], [0], [1], [0, 0, 1, 1], [], []>} : vector<8x16xbf16>, vector<16x256xbf16>, vector<8x256xf32> -> vector<8x256xf32>
    %c0_3 = arith.constant 0 : index
    %c0_4 = arith.constant 0 : index
    %4 = vector.load %arg3[%c0_3, %c0_4] : memref<1x256xf32, #tpu.memory_space<vmem>>, vector<1x256xf32>
    %5 = vector.broadcast %4 : vector<1x256xf32> to vector<8x256xf32>
    %6 = arith.addf %3, %5 : vector<8x256xf32>
    %cst_5 = arith.constant 0.000000e+00 : f32
    %7 = vector.broadcast %cst_5 : f32 to vector<8x256xf32>
    %8 = arith.maximumf %6, %7 : vector<8x256xf32>
    %9 = arith.truncf %8 : vector<8x256xf32> to vector<8x256xbf16>
    %c0_6 = arith.constant 0 : index
    %c0_7 = arith.constant 0 : index
    %10 = vector.load %arg4[%c0_6, %c0_7] : memref<256x256xbf16, #tpu.memory_space<vmem>>, vector<256x256xbf16>
    %cst_8 = arith.constant dense<0.000000e+00> : vector<8x256xf32>
    %11 = tpu.matmul %9, %10, %cst_8 {dimension_numbers = #tpu.dot_dimension_numbers<[1], [0], [0], [1], [0, 0, 1, 1], [], []>} : vector<8x256xbf16>, vector<256x256xbf16>, vector<8x256xf32> -> vector<8x256xf32>
    %c0_9 = arith.constant 0 : index
    %c0_10 = arith.constant 0 : index
    %12 = vector.load %arg5[%c0_9, %c0_10] : memref<1x256xf32, #tpu.memory_space<vmem>>, vector<1x256xf32>
    %13 = vector.broadcast %12 : vector<1x256xf32> to vector<8x256xf32>
    %14 = arith.addf %11, %13 : vector<8x256xf32>
    %cst_11 = arith.constant 0.000000e+00 : f32
    %15 = vector.broadcast %cst_11 : f32 to vector<8x256xf32>
    %16 = arith.maximumf %14, %15 : vector<8x256xf32>
    %17 = arith.truncf %16 : vector<8x256xf32> to vector<8x256xbf16>
    %c0_12 = arith.constant 0 : index
    %c0_13 = arith.constant 0 : index
    %18 = vector.load %arg6[%c0_12, %c0_13] : memref<256x512xbf16, #tpu.memory_space<vmem>>, vector<256x512xbf16>
    %cst_14 = arith.constant dense<0.000000e+00> : vector<8x512xf32>
    %19 = tpu.matmul %17, %18, %cst_14 {dimension_numbers = #tpu.dot_dimension_numbers<[1], [0], [0], [1], [0, 0, 1, 1], [], []>} : vector<8x256xbf16>, vector<256x512xbf16>, vector<8x512xf32> -> vector<8x512xf32>
    %c0_15 = arith.constant 0 : index
    %c0_16 = arith.constant 0 : index
    %20 = vector.load %arg7[%c0_15, %c0_16] : memref<1x512xf32, #tpu.memory_space<vmem>>, vector<1x512xf32>
    %21 = vector.broadcast %20 : vector<1x512xf32> to vector<8x512xf32>
    %22 = arith.addf %19, %21 : vector<8x512xf32>
    %cst_17 = arith.constant 0.000000e+00 : f32
    %23 = vector.broadcast %cst_17 : f32 to vector<8x512xf32>
    %24 = arith.maximumf %22, %23 : vector<8x512xf32>
    %25 = arith.truncf %24 : vector<8x512xf32> to vector<8x512xbf16>
    %c0_18 = arith.constant 0 : index
    %c0_19 = arith.constant 0 : index
    %26 = vector.load %arg8[%c0_18, %c0_19] : memref<512x512xbf16, #tpu.memory_space<vmem>>, vector<512x512xbf16>
    %cst_20 = arith.constant dense<0.000000e+00> : vector<8x512xf32>
    %27 = tpu.matmul %25, %26, %cst_20 {dimension_numbers = #tpu.dot_dimension_numbers<[1], [0], [0], [1], [0, 0, 1, 1], [], []>} : vector<8x512xbf16>, vector<512x512xbf16>, vector<8x512xf32> -> vector<8x512xf32>
    %c0_21 = arith.constant 0 : index
    %c0_22 = arith.constant 0 : index
    %28 = vector.load %arg9[%c0_21, %c0_22] : memref<1x512xf32, #tpu.memory_space<vmem>>, vector<1x512xf32>
    %29 = vector.broadcast %28 : vector<1x512xf32> to vector<8x512xf32>
    %30 = arith.addf %27, %29 : vector<8x512xf32>
    %cst_23 = arith.constant 0.000000e+00 : f32
    %31 = vector.broadcast %cst_23 : f32 to vector<8x512xf32>
    %32 = arith.maximumf %30, %31 : vector<8x512xf32>
    %33 = arith.truncf %32 : vector<8x512xf32> to vector<8x512xbf16>
    %c0_24 = arith.constant 0 : index
    %c0_25 = arith.constant 0 : index
    %34 = vector.load %arg8[%c0_24, %c0_25] : memref<512x512xbf16, #tpu.memory_space<vmem>>, vector<512x512xbf16>
    %cst_26 = arith.constant dense<0.000000e+00> : vector<8x512xf32>
    %35 = tpu.matmul %33, %34, %cst_26 {dimension_numbers = #tpu.dot_dimension_numbers<[1], [0], [0], [1], [0, 0, 1, 1], [], []>} : vector<8x512xbf16>, vector<512x512xbf16>, vector<8x512xf32> -> vector<8x512xf32>
    %c0_27 = arith.constant 0 : index
    %c0_28 = arith.constant 0 : index
    %36 = vector.load %arg9[%c0_27, %c0_28] : memref<1x512xf32, #tpu.memory_space<vmem>>, vector<1x512xf32>
    %37 = vector.broadcast %36 : vector<1x512xf32> to vector<8x512xf32>
    %38 = arith.addf %35, %37 : vector<8x512xf32>
    %cst_29 = arith.constant 0.000000e+00 : f32
    %39 = vector.broadcast %cst_29 : f32 to vector<8x512xf32>
    %40 = arith.maximumf %38, %39 : vector<8x512xf32>
    %41 = arith.truncf %40 : vector<8x512xf32> to vector<8x512xbf16>
    %c0_30 = arith.constant 0 : index
    %c0_31 = arith.constant 0 : index
    %42 = vector.load %arg8[%c0_30, %c0_31] : memref<512x512xbf16, #tpu.memory_space<vmem>>, vector<512x512xbf16>
    %cst_32 = arith.constant dense<0.000000e+00> : vector<8x512xf32>
    %43 = tpu.matmul %41, %42, %cst_32 {dimension_numbers = #tpu.dot_dimension_numbers<[1], [0], [0], [1], [0, 0, 1, 1], [], []>} : vector<8x512xbf16>, vector<512x512xbf16>, vector<8x512xf32> -> vector<8x512xf32>
    %c0_33 = arith.constant 0 : index
    %c0_34 = arith.constant 0 : index
    %44 = vector.load %arg9[%c0_33, %c0_34] : memref<1x512xf32, #tpu.memory_space<vmem>>, vector<1x512xf32>
    %45 = vector.broadcast %44 : vector<1x512xf32> to vector<8x512xf32>
    %46 = arith.addf %43, %45 : vector<8x512xf32>
    %cst_35 = arith.constant 0.000000e+00 : f32
    %47 = vector.broadcast %cst_35 : f32 to vector<8x512xf32>
    %48 = arith.maximumf %46, %47 : vector<8x512xf32>
    %49 = arith.truncf %48 : vector<8x512xf32> to vector<8x512xbf16>
    %c0_36 = arith.constant 0 : index
    %c0_37 = arith.constant 0 : index
    %50 = vector.load %arg10[%c0_36, %c0_37] : memref<512x256xbf16, #tpu.memory_space<vmem>>, vector<512x256xbf16>
    %cst_38 = arith.constant dense<0.000000e+00> : vector<8x256xf32>
    %51 = tpu.matmul %49, %50, %cst_38 {dimension_numbers = #tpu.dot_dimension_numbers<[1], [0], [0], [1], [0, 0, 1, 1], [], []>} : vector<8x512xbf16>, vector<512x256xbf16>, vector<8x256xf32> -> vector<8x256xf32>
    %c0_39 = arith.constant 0 : index
    %c0_40 = arith.constant 0 : index
    %52 = vector.load %arg11[%c0_39, %c0_40] : memref<1x256xf32, #tpu.memory_space<vmem>>, vector<1x256xf32>
    %53 = vector.broadcast %52 : vector<1x256xf32> to vector<8x256xf32>
    %54 = arith.addf %51, %53 : vector<8x256xf32>
    %cst_41 = arith.constant 0.000000e+00 : f32
    %55 = vector.broadcast %cst_41 : f32 to vector<8x256xf32>
    %56 = arith.maximumf %54, %55 : vector<8x256xf32>
    %57 = arith.truncf %56 : vector<8x256xf32> to vector<8x256xbf16>
    %c0_42 = arith.constant 0 : index
    %c0_43 = arith.constant 0 : index
    %58 = vector.load %arg12[%c0_42, %c0_43] : memref<256x8xbf16, #tpu.memory_space<vmem>>, vector<256x8xbf16>
    %cst_44 = arith.constant dense<0.000000e+00> : vector<8x8xf32>
    %59 = tpu.matmul %57, %58, %cst_44 {dimension_numbers = #tpu.dot_dimension_numbers<[1], [0], [0], [1], [0, 0, 1, 1], [], []>} : vector<8x256xbf16>, vector<256x8xbf16>, vector<8x8xf32> -> vector<8x8xf32>
    %c0_45 = arith.constant 0 : index
    %c0_46 = arith.constant 0 : index
    %60 = vector.load %arg13[%c0_45, %c0_46] : memref<1x8xf32, #tpu.memory_space<vmem>>, vector<1x8xf32>
    %61 = vector.broadcast %60 : vector<1x8xf32> to vector<8x8xf32>
    %62 = arith.addf %59, %61 : vector<8x8xf32>
    %63 = math.tanh %62 : vector<8x8xf32>
    %cst_47 = arith.constant 2.000000e+00 : f32
    %64 = vector.broadcast %cst_47 : f32 to vector<8x8xf32>
    %65 = arith.mulf %64, %63 : vector<8x8xf32>
    %c0_48 = arith.constant 0 : index
    %c0_49 = arith.constant 0 : index
    %66 = vector.load %arg14[%c0_48, %c0_49] : memref<8x8xf32, #tpu.memory_space<vmem>>, vector<8x8xf32>
    tpu.vector_store %arg14[%c0_48, %c0_49], %65 {strides = array<i32>} : memref<8x8xf32, #tpu.memory_space<vmem>>, vector<8x8xf32>,
    return
  }
  func.func @transform_0(%arg0: i32) -> (i32, i32) {
    %c0_i32 = arith.constant 0 : i32
    %c0_i32_0 = arith.constant 0 : i32
    return %arg0, %c0_i32 : i32, i32
  }
  func.func @transform_1(%arg0: i32) -> (i32, i32) {
    %c0_i32 = arith.constant 0 : i32
    %c0_i32_0 = arith.constant 0 : i32
    %c0_i32_1 = arith.constant 0 : i32
    return %c0_i32, %c0_i32_0 : i32, i32
  }
  func.func @transform_2(%arg0: i32) -> (i32, i32) {
    %c0_i32 = arith.constant 0 : i32
    %c0_i32_0 = arith.constant 0 : i32
    %c0_i32_1 = arith.constant 0 : i32
    return %c0_i32, %c0_i32_0 : i32, i32
  }
  func.func @transform_3(%arg0: i32) -> (i32, i32) {
    %c0_i32 = arith.constant 0 : i32
    %c0_i32_0 = arith.constant 0 : i32
    %c0_i32_1 = arith.constant 0 : i32
    return %c0_i32, %c0_i32_0 : i32, i32
  }
  func.func @transform_4(%arg0: i32) -> (i32, i32) {
    %c0_i32 = arith.constant 0 : i32
    %c0_i32_0 = arith.constant 0 : i32
    %c0_i32_1 = arith.constant 0 : i32
    return %c0_i32, %c0_i32_0 : i32, i32
  }
  func.func @transform_5(%arg0: i32) -> (i32, i32) {
    %c0_i32 = arith.constant 0 : i32
    %c0_i32_0 = arith.constant 0 : i32
    %c0_i32_1 = arith.constant 0 : i32
    return %c0_i32, %c0_i32_0 : i32, i32
  }
  func.func @transform_6(%arg0: i32) -> (i32, i32) {
    %c0_i32 = arith.constant 0 : i32
    %c0_i32_0 = arith.constant 0 : i32
    %c0_i32_1 = arith.constant 0 : i32
    return %c0_i32, %c0_i32_0 : i32, i32
  }
  func.func @transform_7(%arg0: i32) -> (i32, i32) {
    %c0_i32 = arith.constant 0 : i32
    %c0_i32_0 = arith.constant 0 : i32
    %c0_i32_1 = arith.constant 0 : i32
    return %c0_i32, %c0_i32_0 : i32, i32
  }
  func.func @transform_8(%arg0: i32) -> (i32, i32) {
    %c0_i32 = arith.constant 0 : i32
    %c0_i32_0 = arith.constant 0 : i32
    %c0_i32_1 = arith.constant 0 : i32
    return %c0_i32, %c0_i32_0 : i32, i32
  }
  func.func @transform_9(%arg0: i32) -> (i32, i32) {
    %c0_i32 = arith.constant 0 : i32
    %c0_i32_0 = arith.constant 0 : i32
    %c0_i32_1 = arith.constant 0 : i32
    return %c0_i32, %c0_i32_0 : i32, i32
  }
  func.func @transform_10(%arg0: i32) -> (i32, i32) {
    %c0_i32 = arith.constant 0 : i32
    %c0_i32_0 = arith.constant 0 : i32
    %c0_i32_1 = arith.constant 0 : i32
    return %c0_i32, %c0_i32_0 : i32, i32
  }
  func.func @transform_11(%arg0: i32) -> (i32, i32) {
    %c0_i32 = arith.constant 0 : i32
    %c0_i32_0 = arith.constant 0 : i32
    %c0_i32_1 = arith.constant 0 : i32
    return %c0_i32, %c0_i32_0 : i32, i32
  }
  func.func @transform_12(%arg0: i32) -> (i32, i32) {
    %c0_i32 = arith.constant 0 : i32
    %c0_i32_0 = arith.constant 0 : i32
    %c0_i32_1 = arith.constant 0 : i32
    return %c0_i32, %c0_i32_0 : i32, i32
  }
  func.func @transform_13(%arg0: i32) -> (i32, i32) {
    %c0_i32 = arith.constant 0 : i32
    %c0_i32_0 = arith.constant 0 : i32
    return %arg0, %c0_i32 : i32, i32
  }
}

</mosaic_0001>

<llo_original>
// kernel: tpu_custom_call.1
$region0: #{tpu_custom_call.1}
  #allocation0 [shape = 'u32[]', space=smem, size = 0x4, offset = 0x4, fixed_abs, tag = 'smem constant byte address 0x4 - core index']
  #allocation1 [shape = 'u32[144,128]{1,0:T(1,128)}', space=vmem, size = 0x12000, scoped, tag = 'internal scratch']
  %s0 = inlined_call_operand.vmem [shape: f32[8,16], index: 0, kind: input, shape index: {}]
  %s1 = inlined_call_operand.vmem [shape: bf16[16,256], index: 1, kind: input, shape index: {}]
  %s2 = inlined_call_operand.vmem [shape: f32[1,256], index: 2, kind: input, shape index: {}]
  %s3 = inlined_call_operand.hbm [shape: bf16[256,256], index: 3, kind: input, shape index: {}]
  %s4 = inlined_call_operand.vmem [shape: f32[1,256], index: 4, kind: input, shape index: {}]
  %s5 = inlined_call_operand.hbm [shape: bf16[256,512], index: 5, kind: input, shape index: {}]
  %s6 = inlined_call_operand.vmem [shape: f32[1,512], index: 6, kind: input, shape index: {}]
  %s7 = inlined_call_operand.hbm [shape: bf16[512,512], index: 7, kind: input, shape index: {}]
  %s8 = inlined_call_operand.vmem [shape: f32[1,512], index: 8, kind: input, shape index: {}]
  %s9 = inlined_call_operand.hbm [shape: bf16[512,256], index: 9, kind: input, shape index: {}]
  %s10 = inlined_call_operand.vmem [shape: f32[1,256], index: 10, kind: input, shape index: {}]
  %s11 = inlined_call_operand.vmem [shape: bf16[256,8], index: 11, kind: input, shape index: {}]
  %s12 = inlined_call_operand.vmem [shape: f32[1,8], index: 12, kind: input, shape index: {}]
  %s13 = inlined_call_operand.hbm [shape: f32[8,8], index: 13, kind: output, shape index: {}]
  %s14 = sld [smem:[#allocation0]]
  $region78: #{tpu_custom_call.1} parent=0
    _
  %s16 = ssub.s32 1, %s14
  %s17 = scalar_select 0, %s16, %s14
  $region1: #{tpu_custom_call.1} parent=0
    #allocation2 [shape = 'u8[131072]{0}', space=vmem, size = 0x20000, scoped, tag = 'input window, operand 3, single buffered']
    #allocation3 [shape = 's32[1]{0}', space=sflag, size = 0x4, scoped, tag = 'scoped memory for tpu_custom_call.1']
    #allocation4 [shape = 's32[1]{0}', space=sflag, size = 0x4, scoped, tag = 'scoped memory for tpu_custom_call.1']
    #allocation5 [shape = 'u8[262144]{0}', space=vmem, size = 0x40000, scoped, tag = 'input window, operand 5, single buffered']
    #allocation6 [shape = 's32[1]{0}', space=sflag, size = 0x4, scoped, tag = 'scoped memory for tpu_custom_call.1']
    #allocation7 [shape = 'u8[524288]{0}', space=vmem, size = 0x80000, scoped, tag = 'input window, operand 7, single buffered']
    #allocation8 [shape = 'u8[262144]{0}', space=vmem, size = 0x40000, scoped, tag = 'input window, operand 9, single buffered']
    #allocation9 [shape = 's32[1]{0}', space=sflag, size = 0x4, scoped, tag = 'scoped memory for tpu_custom_call.1']
    #allocation10 [shape = 'u8[4096]{0}', space=vmem, size = 0x1000, scoped, tag = 'output window, operand 0, single buffered']
    %18 = vsyncpa [#allocation3], 0
    %19 = vsyncpa [#allocation6], 0
    %20 = vsyncpa [#allocation9], 0
    %21 = vsyncpa [#allocation4], 0
    // Predicated region
    $region2: #{tpu_custom_call.1} parent=1 // pred_check
      _
    $region3: #{tpu_custom_call.1} parent=1 // pred_check_branch
      %23 = sbr.rel (0) target = $region5
    $region4: #{tpu_custom_call.1} parent=1 // pred_region
      _
    $region5: #{tpu_custom_call.1} parent=1 // pred_fallthru
      _
    // Predicated region
    $region6: #{tpu_custom_call.1} parent=1 // pred_check
      _
    $region7: #{tpu_custom_call.1} parent=1 // pred_check_branch
      %25 = sbr.rel (0) target = $region9
    $region8: #{tpu_custom_call.1} parent=1 // pred_region
      _
    $region9: #{tpu_custom_call.1} parent=1 // pred_fallthru
      _
    // Predicated region
    $region10: #{tpu_custom_call.1} parent=1 // pred_check
      _
    $region11: #{tpu_custom_call.1} parent=1 // pred_check_branch
      %27 = sbr.rel (0) target = $region13
    $region12: #{tpu_custom_call.1} parent=1 // pred_region
      _
    $region13: #{tpu_custom_call.1} parent=1 // pred_fallthru
      _
    // Predicated region
    $region14: #{tpu_custom_call.1} parent=1 // pred_check
      _
    $region15: #{tpu_custom_call.1} parent=1 // pred_check_branch
      %29 = sbr.rel (0) target = $region17
    $region16: #{tpu_custom_call.1} parent=1 // pred_region
      %s31 = ssub.s32 4096, 4096
      %32 = vsyncadd [#allocation3], %s31
      %s33 = sshll.u32 [#allocation2], 4
      %s34 = int_to_ptr.vmem [resolvable:$true] %s33
      %39 = dma.hbm_to_vmem [thread:$0]  %s3, 4096, %s34, [#allocation3], 128, 128, 8
    $region17: #{tpu_custom_call.1} parent=1 // pred_fallthru
      _
    // Predicated region
    $region18: #{tpu_custom_call.1} parent=1 // pred_check
      _
    $region19: #{tpu_custom_call.1} parent=1 // pred_check_branch
      %41 = sbr.rel (0) target = $region21
    $region20: #{tpu_custom_call.1} parent=1 // pred_region
      _
    $region21: #{tpu_custom_call.1} parent=1 // pred_fallthru
      _
    // Predicated region
    $region22: #{tpu_custom_call.1} parent=1 // pred_check
      _
    $region23: #{tpu_custom_call.1} parent=1 // pred_check_branch
      %43 = sbr.rel (0) target = $region25
    $region24: #{tpu_custom_call.1} parent=1 // pred_region
      %s45 = ssub.s32 8192, 8192
      %46 = vsyncadd [#allocation6], %s45
      %s47 = sshll.u32 [#allocation5], 4
      %s48 = int_to_ptr.vmem [resolvable:$true] %s47
      %53 = dma.hbm_to_vmem [thread:$0]  %s5, 8192, %s48, [#allocation6], 256, 256, 16
    $region25: #{tpu_custom_call.1} parent=1 // pred_fallthru
      _
    // Predicated region
    $region26: #{tpu_custom_call.1} parent=1 // pred_check
      _
    $region27: #{tpu_custom_call.1} parent=1 // pred_check_branch
      %55 = sbr.rel (0) target = $region29
    $region28: #{tpu_custom_call.1} parent=1 // pred_region
      _
    $region29: #{tpu_custom_call.1} parent=1 // pred_fallthru
      _
    // Predicated region
    $region30: #{tpu_custom_call.1} parent=1 // pred_check
      _
    $region31: #{tpu_custom_call.1} parent=1 // pred_check_branch
      %57 = sbr.rel (0) target = $region33
    $region32: #{tpu_custom_call.1} parent=1 // pred_region
      %s59 = ssub.s32 16384, 16384
      %60 = vsyncadd [#allocation6], %s59
      %s61 = sshll.u32 [#allocation7], 4
      %s62 = int_to_ptr.vmem [resolvable:$true] %s61
      %67 = dma.hbm_to_vmem [thread:$0]  %s7, 16384, %s62, [#allocation6], 256, 256, 16
    $region33: #{tpu_custom_call.1} parent=1 // pred_fallthru
      _
    // Predicated region
    $region34: #{tpu_custom_call.1} parent=1 // pred_check
      _
    $region35: #{tpu_custom_call.1} parent=1 // pred_check_branch
      %69 = sbr.rel (0) target = $region37
    $region36: #{tpu_custom_call.1} parent=1 // pred_region
      _
    $region37: #{tpu_custom_call.1} parent=1 // pred_fallthru
      _
    // Predicated region
    $region38: #{tpu_custom_call.1} parent=1 // pred_check
      _
    $region39: #{tpu_custom_call.1} parent=1 // pred_check_branch
      %71 = sbr.rel (0) target = $region41
    $region40: #{tpu_custom_call.1} parent=1 // pred_region
      %s73 = ssub.s32 8192, 8192
      %74 = vsyncadd [#allocation9], %s73
      %s75 = sshll.u32 [#allocation8], 4
      %s76 = int_to_ptr.vmem [resolvable:$true] %s75
      %81 = dma.hbm_to_vmem [thread:$0]  %s9, 8192, %s76, [#allocation9], 128, 128, 8
    $region41: #{tpu_custom_call.1} parent=1 // pred_fallthru
      _
    // Predicated region
    $region42: #{tpu_custom_call.1} parent=1 // pred_check
      _
    $region43: #{tpu_custom_call.1} parent=1 // pred_check_branch
      %83 = sbr.rel (0) target = $region45
    $region44: #{tpu_custom_call.1} parent=1 // pred_region
      _
    $region45: #{tpu_custom_call.1} parent=1 // pred_fallthru
      _
    // Predicated region
    $region46: #{tpu_custom_call.1} parent=1 // pred_check
      _
    $region47: #{tpu_custom_call.1} parent=1 // pred_check_branch
      %85 = sbr.rel (0) target = $region49
    $region48: #{tpu_custom_call.1} parent=1 // pred_region
      _
    $region49: #{tpu_custom_call.1} parent=1 // pred_fallthru
      _
    // Predicated region
    $region50: #{tpu_custom_call.1} parent=1 // pred_check
      _
    $region51: #{tpu_custom_call.1} parent=1 // pred_check_branch
      %87 = sbr.rel (0) target = $region53
    $region52: #{tpu_custom_call.1} parent=1 // pred_region
      _
    $region53: #{tpu_custom_call.1} parent=1 // pred_fallthru
      _
    // Predicated region
    $region54: #{tpu_custom_call.1} parent=1 // pred_check
      _
    $region55: #{tpu_custom_call.1} parent=1 // pred_check_branch
      %89 = sbr.rel (0) target = $region57
    $region56: #{tpu_custom_call.1} parent=1 // pred_region
      %90 = dma.done [#allocation3], 4096
    $region57: #{tpu_custom_call.1} parent=1 // pred_fallthru
      _
    // Predicated region
    $region58: #{tpu_custom_call.1} parent=1 // pred_check
      _
    $region59: #{tpu_custom_call.1} parent=1 // pred_check_branch
      %92 = sbr.rel (0) target = $region61
    $region60: #{tpu_custom_call.1} parent=1 // pred_region
      %93 = dma.done [#allocation6], 8192
    $region61: #{tpu_custom_call.1} parent=1 // pred_fallthru
      _
    // Predicated region
    $region62: #{tpu_custom_call.1} parent=1 // pred_check
      _
    $region63: #{tpu_custom_call.1} parent=1 // pred_check_branch
      %95 = sbr.rel (0) target = $region65
    $region64: #{tpu_custom_call.1} parent=1 // pred_region
      %96 = dma.done [#allocation6], 16384
    $region65: #{tpu_custom_call.1} parent=1 // pred_fallthru
      _
    // Predicated region
    $region66: #{tpu_custom_call.1} parent=1 // pred_check
      _
    $region67: #{tpu_custom_call.1} parent=1 // pred_check_branch
      %98 = sbr.rel (0) target = $region69
    $region68: #{tpu_custom_call.1} parent=1 // pred_region
      %99 = dma.done [#allocation9], 8192
    $region69: #{tpu_custom_call.1} parent=1 // pred_fallthru
      _
    %v101 = vld [vmem:[%s0] sm:$0xff]
    %v102 = vpack.c.bf16 %v101, %v101
    %v103 = vld [vmem:[%s1] sm:$0xff]
    %v104 = vld [vmem:[%s1 + $0x8] sm:$0xff]
    %v105 = vld [vmem:[%s2] sm:$0x3]
    %v107 = vlaneseq
    %v108 = vshrl.u32 %v107, 7
    %v109 = vsub.s32 0, %v108
    %v110 = vrot.slane %v105, %v109
    %v111 = vlaneseq
    %v112 = vshrl.u32 %v111, 7
    %v113 = vsub.s32 1, %v112
    %v114 = vrot.slane %v105, %v113
    %v119 = vunpack.c.l.b16 %v103
    %v120 = vunpack.c.h.b16 %v103
    %v121 = vunpack.c.l.b16 %v104
    %v122 = vunpack.c.h.b16 %v104
    %v123 = vpack.c.b16 %v121, %v119
    %v124 = vpack.c.b16 %v122, %v120
    %vm127 = vcmask 130048
    %v129 = vsel %vm127, %v102, 0
    %131 = vmatprep.subr.bf16.mxu0 %v124
    %132 = vmatpush1.bf16.msra.mxu0 %v123
    %133 = vmatprep.subr.bf16.mxu0 0
    %134 = vmatpush1.bf16.msra.mxu0 0
    %135 = vmatprep.subr.bf16.mxu0 0
    %136 = vmatpush1.bf16.msra.mxu0 0
    %137 = vmatprep.subr.bf16.mxu0 0
    %138 = vmatpush1.bf16.msra.mxu0 0
    %139 = vmatprep.subr.bf16.mxu0 0
    %140 = vmatpush1.bf16.msra.mxu0 0
    %141 = vmatprep.subr.bf16.mxu0 0
    %142 = vmatpush1.bf16.msra.mxu0 0
    %143 = vmatprep.subr.bf16.mxu0 0
    %144 = vmatpush1.bf16.msra.mxu0 0
    %145 = vmatprep.subr.bf16.mxu0 0
    %146 = vmatpush1.bf16.msra.mxu0 0
    %147 = vmatprep.subr.bf16.mxu0 0
    %148 = vmatpush1.bf16.msra.mxu0 0
    %149 = vmatprep.subr.bf16.mxu0 0
    %150 = vmatpush1.bf16.msra.mxu0 0
    %151 = vmatprep.subr.bf16.mxu0 0
    %152 = vmatpush1.bf16.msra.mxu0 0
    %153 = vmatprep.subr.bf16.mxu0 0
    %154 = vmatpush1.bf16.msra.mxu0 0
    %155 = vmatprep.subr.bf16.mxu0 0
    %156 = vmatpush1.bf16.msra.mxu0 0
    %157 = vmatprep.subr.bf16.mxu0 0
    %158 = vmatpush1.bf16.msra.mxu0 0
    %159 = vmatprep.subr.bf16.mxu0 0
    %160 = vmatpush1.bf16.msra.mxu0 0
    %161 = vmatprep.subr.bf16.mxu0 0
    %162 = vmatpush1.bf16.msra.mxu0 0
    %163 = vmatprep.mubr.bf16.mxu0 0
    %164 = vmatmul.mubr.bf16.gmra.mrb[0].mxu0 %v129
    %v165 = vpop.f32.mrb[0].mxu0
    %v166 = vadd.f32 %v110, %v165
    %v167 = vpop.f32.mrb[0].mxu0
    %v168 = vadd.f32 %v114, %v167
    %v169 = vpop.f32.mrb[0].mxu0
    %v170 = vpop.f32.mrb[0].mxu0
    %171 = vdwg.mxu0
    %v172 = vmax.f32 %v166, 0.0
    %v173 = vmax.f32 %v168, 0.0
    %v174 = vpack.c.bf16 %v172, %v172
    %v175 = vpack.c.bf16 %v173, %v173
    %v176 = vld [vmem:[#allocation2] sm:$0xff]
    %v177 = vld [vmem:[#allocation2 + $0x8] sm:$0xff]
    %v178 = vld [vmem:[#allocation2 + $0x10] sm:$0xff]
    %v179 = vld [vmem:[#allocation2 + $0x18] sm:$0xff]
    %v180 = vld [vmem:[#allocation2 + $0x20] sm:$0xff]
    %v181 = vld [vmem:[#allocation2 + $0x28] sm:$0xff]
    %v182 = vld [vmem:[#allocation2 + $0x30] sm:$0xff]
    %v183 = vld [vmem:[#allocation2 + $0x38] sm:$0xff]
    %v184 = vld [vmem:[#allocation2 + $0x40] sm:$0xff]
    %v185 = vld [vmem:[#allocation2 + $0x48] sm:$0xff]
    %v186 = vld [vmem:[#allocation2 + $0x50] sm:$0xff]
    %v187 = vld [vmem:[#allocation2 + $0x58] sm:$0xff]
    %v188 = vld [vmem:[#allocation2 + $0x60] sm:$0xff]
    %v189 = vld [vmem:[#allocation2 + $0x68] sm:$0xff]
    %v190 = vld [vmem:[#allocation2 + $0x70] sm:$0xff]
    %v191 = vld [vmem:[#allocation2 + $0x78] sm:$0xff]
    %v192 = vld [vmem:[#allocation2 + $0x80] sm:$0xff]
    %v193 = vld [vmem:[#allocation2 + $0x88] sm:$0xff]
    %v194 = vld [vmem:[#allocation2 + $0x90] sm:$0xff]
    %v195 = vld [vmem:[#allocation2 + $0x98] sm:$0xff]
    %v196 = vld [vmem:[#allocation2 + $0xa0] sm:$0xff]
    %v197 = vld [vmem:[#allocation2 + $0xa8] sm:$0xff]
    %v198 = vld [vmem:[#allocation2 + $0xb0] sm:$0xff]
    %v199 = vld [vmem:[#allocation2 + $0xb8] sm:$0xff]
    %v200 = vld [vmem:[#allocation2 + $0xc0] sm:$0xff]
    %v201 = vld [vmem:[#allocation2 + $0xc8] sm:$0xff]
    %v202 = vld [vmem:[#allocation2 + $0xd0] sm:$0xff]
    %v203 = vld [vmem:[#allocation2 + $0xd8] sm:$0xff]
    %v204 = vld [vmem:[#allocation2 + $0xe0] sm:$0xff]
    %v205 = vld [vmem:[#allocation2 + $0xe8] sm:$0xff]
    %v206 = vld [vmem:[#allocation2 + $0xf0] sm:$0xff]
    %v207 = vld [vmem:[#allocation2 + $0xf8] sm:$0xff]
    %v208 = vld [vmem:[%s4] sm:$0x3]
    %v210 = vlaneseq
    %v211 = vshrl.u32 %v210, 7
    %v212 = vsub.s32 0, %v211
    %v213 = vrot.slane %v208, %v212
    %v214 = vlaneseq
    %v215 = vshrl.u32 %v214, 7
    %v216 = vsub.s32 1, %v215
    %v217 = vrot.slane %v208, %v216
    %v252 = vunpack.c.l.b16 %v176
    %v253 = vunpack.c.h.b16 %v176
    %v254 = vunpack.c.l.b16 %v177
    %v255 = vunpack.c.h.b16 %v177
    %v256 = vunpack.c.l.b16 %v178
    %v257 = vunpack.c.h.b16 %v178
    %v258 = vunpack.c.l.b16 %v179
    %v259 = vunpack.c.h.b16 %v179
    %v260 = vunpack.c.l.b16 %v180
    %v261 = vunpack.c.h.b16 %v180
    %v262 = vunpack.c.l.b16 %v181
    %v263 = vunpack.c.h.b16 %v181
    %v264 = vunpack.c.l.b16 %v182
    %v265 = vunpack.c.h.b16 %v182
    %v266 = vunpack.c.l.b16 %v183
    %v267 = vunpack.c.h.b16 %v183
    %v268 = vunpack.c.l.b16 %v184
    %v269 = vunpack.c.h.b16 %v184
    %v270 = vunpack.c.l.b16 %v185
    %v271 = vunpack.c.h.b16 %v185
    %v272 = vunpack.c.l.b16 %v186
    %v273 = vunpack.c.h.b16 %v186
    %v274 = vunpack.c.l.b16 %v187
    %v275 = vunpack.c.h.b16 %v187
    %v276 = vunpack.c.l.b16 %v188
    %v277 = vunpack.c.h.b16 %v188
    %v278 = vunpack.c.l.b16 %v189
    %v279 = vunpack.c.h.b16 %v189
    %v280 = vunpack.c.l.b16 %v190
    %v281 = vunpack.c.h.b16 %v190
    %v282 = vunpack.c.l.b16 %v191
    %v283 = vunpack.c.h.b16 %v191
    %v284 = vunpack.c.l.b16 %v192
    %v285 = vunpack.c.h.b16 %v192
    %v286 = vunpack.c.l.b16 %v193
    %v287 = vunpack.c.h.b16 %v193
    %v288 = vunpack.c.l.b16 %v194
    %v289 = vunpack.c.h.b16 %v194
    %v290 = vunpack.c.l.b16 %v195
    %v291 = vunpack.c.h.b16 %v195
    %v292 = vunpack.c.l.b16 %v196
    %v293 = vunpack.c.h.b16 %v196
    %v294 = vunpack.c.l.b16 %v197
    %v295 = vunpack.c.h.b16 %v197
    %v296 = vunpack.c.l.b16 %v198
    %v297 = vunpack.c.h.b16 %v198
    %v298 = vunpack.c.l.b16 %v199
    %v299 = vunpack.c.h.b16 %v199
    %v300 = vunpack.c.l.b16 %v200
    %v301 = vunpack.c.h.b16 %v200
    %v302 = vunpack.c.l.b16 %v201
    %v303 = vunpack.c.h.b16 %v201
    %v304 = vunpack.c.l.b16 %v202
    %v305 = vunpack.c.h.b16 %v202
    %v306 = vunpack.c.l.b16 %v203
    %v307 = vunpack.c.h.b16 %v203
    %v308 = vunpack.c.l.b16 %v204
    %v309 = vunpack.c.h.b16 %v204
    %v310 = vunpack.c.l.b16 %v205
    %v311 = vunpack.c.h.b16 %v205
    %v312 = vunpack.c.l.b16 %v206
    %v313 = vunpack.c.h.b16 %v206
    %v314 = vunpack.c.l.b16 %v207
    %v315 = vunpack.c.h.b16 %v207
    %v316 = vpack.c.b16 %v254, %v252
    %v317 = vpack.c.b16 %v255, %v253
    %v318 = vpack.c.b16 %v258, %v256
    %v319 = vpack.c.b16 %v259, %v257
    %v320 = vpack.c.b16 %v262, %v260
    %v321 = vpack.c.b16 %v263, %v261
    %v322 = vpack.c.b16 %v266, %v264
    %v323 = vpack.c.b16 %v267, %v265
    %v324 = vpack.c.b16 %v270, %v268
    %v325 = vpack.c.b16 %v271, %v269
    %v326 = vpack.c.b16 %v274, %v272
    %v327 = vpack.c.b16 %v275, %v273
    %v328 = vpack.c.b16 %v278, %v276
    %v329 = vpack.c.b16 %v279, %v277
    %v330 = vpack.c.b16 %v282, %v280
    %v331 = vpack.c.b16 %v283, %v281
    %v332 = vpack.c.b16 %v286, %v284
    %v333 = vpack.c.b16 %v287, %v285
    %v334 = vpack.c.b16 %v290, %v288
    %v335 = vpack.c.b16 %v291, %v289
    %v336 = vpack.c.b16 %v294, %v292
    %v337 = vpack.c.b16 %v295, %v293
    %v338 = vpack.c.b16 %v298, %v296
    %v339 = vpack.c.b16 %v299, %v297
    %v340 = vpack.c.b16 %v302, %v300
    %v341 = vpack.c.b16 %v303, %v301
    %v342 = vpack.c.b16 %v306, %v304
    %v343 = vpack.c.b16 %v307, %v305
    %v344 = vpack.c.b16 %v310, %v308
    %v345 = vpack.c.b16 %v311, %v309
    %v346 = vpack.c.b16 %v314, %v312
    %v347 = vpack.c.b16 %v315, %v313
    %380 = vmatprep.subr.bf16.mxu0 %v317
    %381 = vmatpush1.bf16.msra.mxu0 %v316
    %382 = vmatprep.subr.bf16.mxu0 %v319
    %383 = vmatpush1.bf16.msra.mxu0 %v318
    %384 = vmatprep.subr.bf16.mxu0 %v321
    %385 = vmatpush1.bf16.msra.mxu0 %v320
    %386 = vmatprep.subr.bf16.mxu0 %v323
    %387 = vmatpush1.bf16.msra.mxu0 %v322
    %388 = vmatprep.subr.bf16.mxu0 %v325
    %389 = vmatpush1.bf16.msra.mxu0 %v324
    %390 = vmatprep.subr.bf16.mxu0 %v327
    %391 = vmatpush1.bf16.msra.mxu0 %v326
    %392 = vmatprep.subr.bf16.mxu0 %v329
    %393 = vmatpush1.bf16.msra.mxu0 %v328
    %394 = vmatprep.subr.bf16.mxu0 %v331
    %395 = vmatpush1.bf16.msra.mxu0 %v330
    %396 = vmatprep.subr.bf16.mxu0 %v333
    %397 = vmatpush1.bf16.msra.mxu0 %v332
    %398 = vmatprep.subr.bf16.mxu0 %v335
    %399 = vmatpush1.bf16.msra.mxu0 %v334
    %400 = vmatprep.subr.bf16.mxu0 %v337
    %401 = vmatpush1.bf16.msra.mxu0 %v336
    %402 = vmatprep.subr.bf16.mxu0 %v339
    %403 = vmatpush1.bf16.msra.mxu0 %v338
    %404 = vmatprep.subr.bf16.mxu0 %v341
    %405 = vmatpush1.bf16.msra.mxu0 %v340
    %406 = vmatprep.subr.bf16.mxu0 %v343
    %407 = vmatpush1.bf16.msra.mxu0 %v342
    %408 = vmatprep.subr.bf16.mxu0 %v345
    %409 = vmatpush1.bf16.msra.mxu0 %v344
    %410 = vmatprep.subr.bf16.mxu0 %v347
    %411 = vmatpush1.bf16.msra.mxu0 %v346
    %412 = vmatprep.mubr.bf16.mxu0 %v175
    %413 = vmatmul.mubr.bf16.gmra.mrb[0].mxu0 %v174
    %v414 = vpop.f32.mrb[0].mxu0
    %v415 = vadd.f32 %v213, %v414
    %v416 = vpop.f32.mrb[0].mxu0
    %v417 = vadd.f32 %v217, %v416
    %v418 = vpop.f32.mrb[0].mxu0
    %v419 = vpop.f32.mrb[0].mxu0
    %420 = vdwg.mxu0
    %v421 = vmax.f32 %v415, 0.0
    %v422 = vmax.f32 %v417, 0.0
    %v423 = vpack.c.bf16 %v421, %v421
    %v424 = vpack.c.bf16 %v422, %v422
    %v425 = vld [vmem:[#allocation5] sm:$0xff]
    %v426 = vld [vmem:[#allocation5 + $0x8] sm:$0xff]
    %v427 = vld [vmem:[#allocation5 + $0x10] sm:$0xff]
    %v428 = vld [vmem:[#allocation5 + $0x18] sm:$0xff]
    %v429 = vld [vmem:[#allocation5 + $0x20] sm:$0xff]
    %v430 = vld [vmem:[#allocation5 + $0x28] sm:$0xff]
    %v431 = vld [vmem:[#allocation5 + $0x30] sm:$0xff]
    %v432 = vld [vmem:[#allocation5 + $0x38] sm:$0xff]
    %v433 = vld [vmem:[#allocation5 + $0x40] sm:$0xff]
    %v434 = vld [vmem:[#allocation5 + $0x48] sm:$0xff]
    %v435 = vld [vmem:[#allocation5 + $0x50] sm:$0xff]
    %v436 = vld [vmem:[#allocation5 + $0x58] sm:$0xff]
    %v437 = vld [vmem:[#allocation5 + $0x60] sm:$0xff]
    %v438 = vld [vmem:[#allocation5 + $0x68] sm:$0xff]
    %v439 = vld [vmem:[#allocation5 + $0x70] sm:$0xff]
    %v440 = vld [vmem:[#allocation5 + $0x78] sm:$0xff]
    %v441 = vld [vmem:[#allocation5 + $0x80] sm:$0xff]
    %v442 = vld [vmem:[#allocation5 + $0x88] sm:$0xff]
    %v443 = vld [vmem:[#allocation5 + $0x90] sm:$0xff]
    %v444 = vld [vmem:[#allocation5 + $0x98] sm:$0xff]
    %v445 = vld [vmem:[#allocation5 + $0xa0] sm:$0xff]
    %v446 = vld [vmem:[#allocation5 + $0xa8] sm:$0xff]
    %v447 = vld [vmem:[#allocation5 + $0xb0] sm:$0xff]
    %v448 = vld [vmem:[#allocation5 + $0xb8] sm:$0xff]
    %v449 = vld [vmem:[#allocation5 + $0xc0] sm:$0xff]
    %v450 = vld [vmem:[#allocation5 + $0xc8] sm:$0xff]
    %v451 = vld [vmem:[#allocation5 + $0xd0] sm:$0xff]
    %v452 = vld [vmem:[#allocation5 + $0xd8] sm:$0xff]
    %v453 = vld [vmem:[#allocation5 + $0xe0] sm:$0xff]
    %v454 = vld [vmem:[#allocation5 + $0xe8] sm:$0xff]
    %v455 = vld [vmem:[#allocation5 + $0xf0] sm:$0xff]
    %v456 = vld [vmem:[#allocation5 + $0xf8] sm:$0xff]
    %v457 = vld [vmem:[#allocation5 + $0x100] sm:$0xff]
    %v458 = vld [vmem:[#allocation5 + $0x108] sm:$0xff]
    %v459 = vld [vmem:[#allocation5 + $0x110] sm:$0xff]
    %v460 = vld [vmem:[#allocation5 + $0x118] sm:$0xff]
    %v461 = vld [vmem:[#allocation5 + $0x120] sm:$0xff]
    %v462 = vld [vmem:[#allocation5 + $0x128] sm:$0xff]
    %v463 = vld [vmem:[#allocation5 + $0x130] sm:$0xff]
    %v464 = vld [vmem:[#allocation5 + $0x138] sm:$0xff]
    %v465 = vld [vmem:[#allocation5 + $0x140] sm:$0xff]
    %v466 = vld [vmem:[#allocation5 + $0x148] sm:$0xff]
    %v467 = vld [vmem:[#allocation5 + $0x150] sm:$0xff]
    %v468 = vld [vmem:[#allocation5 + $0x158] sm:$0xff]
    %v469 = vld [vmem:[#allocation5 + $0x160] sm:$0xff]
    %v470 = vld [vmem:[#allocation5 + $0x168] sm:$0xff]
    %v471 = vld [vmem:[#allocation5 + $0x170] sm:$0xff]
    %v472 = vld [vmem:[#allocation5 + $0x178] sm:$0xff]
    %v473 = vld [vmem:[#allocation5 + $0x180] sm:$0xff]
    %v474 = vld [vmem:[#allocation5 + $0x188] sm:$0xff]
    %v475 = vld [vmem:[#allocation5 + $0x190] sm:$0xff]
    %v476 = vld [vmem:[#allocation5 + $0x198] sm:$0xff]
    %v477 = vld [vmem:[#allocation5 + $0x1a0] sm:$0xff]
    %v478 = vld [vmem:[#allocation5 + $0x1a8] sm:$0xff]
    %v479 = vld [vmem:[#allocation5 + $0x1b0] sm:$0xff]
    %v480 = vld [vmem:[#allocation5 + $0x1b8] sm:$0xff]
    %v481 = vld [vmem:[#allocation5 + $0x1c0] sm:$0xff]
    %v482 = vld [vmem:[#allocation5 + $0x1c8] sm:$0xff]
    %v483 = vld [vmem:[#allocation5 + $0x1d0] sm:$0xff]
    %v484 = vld [vmem:[#allocation5 + $0x1d8] sm:$0xff]
    %v485 = vld [vmem:[#allocation5 + $0x1e0] sm:$0xff]
    %v486 = vld [vmem:[#allocation5 + $0x1e8] sm:$0xff]
    %v487 = vld [vmem:[#allocation5 + $0x1f0] sm:$0xff]
    %v488 = vld [vmem:[#allocation5 + $0x1f8] sm:$0xff]
    %v489 = vld [vmem:[%s6] sm:$0xf]
    %v491 = vlaneseq
    %v492 = vshrl.u32 %v491, 7
    %v493 = vsub.s32 0, %v492
    %v494 = vrot.slane %v489, %v493
    %v495 = vlaneseq
    %v496 = vshrl.u32 %v495, 7
    %v497 = vsub.s32 1, %v496
    %v498 = vrot.slane %v489, %v497
    %v499 = vlaneseq
    %v500 = vshrl.u32 %v499, 7
    %v501 = vsub.s32 2, %v500
    %v502 = vrot.slane %v489, %v501
    %v503 = vlaneseq
    %v504 = vshrl.u32 %v503, 7
    %v505 = vsub.s32 3, %v504
    %v506 = vrot.slane %v489, %v505
    %v575 = vunpack.c.l.b16 %v425
    %v576 = vunpack.c.h.b16 %v425
    %v577 = vunpack.c.l.b16 %v426
    %v578 = vunpack.c.h.b16 %v426
    %v579 = vunpack.c.l.b16 %v427
    %v580 = vunpack.c.h.b16 %v427
    %v581 = vunpack.c.l.b16 %v428
    %v582 = vunpack.c.h.b16 %v428
    %v583 = vunpack.c.l.b16 %v429
    %v584 = vunpack.c.h.b16 %v429
    %v585 = vunpack.c.l.b16 %v430
    %v586 = vunpack.c.h.b16 %v430
    %v587 = vunpack.c.l.b16 %v431
    %v588 = vunpack.c.h.b16 %v431
    %v589 = vunpack.c.l.b16 %v432
    %v590 = vunpack.c.h.b16 %v432
    %v591 = vunpack.c.l.b16 %v433
    %v592 = vunpack.c.h.b16 %v433
    %v593 = vunpack.c.l.b16 %v434
    %v594 = vunpack.c.h.b16 %v434
    %v595 = vunpack.c.l.b16 %v435
    %v596 = vunpack.c.h.b16 %v435
    %v597 = vunpack.c.l.b16 %v436
    %v598 = vunpack.c.h.b16 %v436
    %v599 = vunpack.c.l.b16 %v437
    %v600 = vunpack.c.h.b16 %v437
    %v601 = vunpack.c.l.b16 %v438
    %v602 = vunpack.c.h.b16 %v438
    %v603 = vunpack.c.l.b16 %v439
    %v604 = vunpack.c.h.b16 %v439
    %v605 = vunpack.c.l.b16 %v440
    %v606 = vunpack.c.h.b16 %v440
    %v607 = vunpack.c.l.b16 %v441
    %v608 = vunpack.c.h.b16 %v441
    %v609 = vunpack.c.l.b16 %v442
    %v610 = vunpack.c.h.b16 %v442
    %v611 = vunpack.c.l.b16 %v443
    %v612 = vunpack.c.h.b16 %v443
    %v613 = vunpack.c.l.b16 %v444
    %v614 = vunpack.c.h.b16 %v444
    %v615 = vunpack.c.l.b16 %v445
    %v616 = vunpack.c.h.b16 %v445
    %v617 = vunpack.c.l.b16 %v446
    %v618 = vunpack.c.h.b16 %v446
    %v619 = vunpack.c.l.b16 %v447
    %v620 = vunpack.c.h.b16 %v447
    %v621 = vunpack.c.l.b16 %v448
    %v622 = vunpack.c.h.b16 %v448
    %v623 = vunpack.c.l.b16 %v449
    %v624 = vunpack.c.h.b16 %v449
    %v625 = vunpack.c.l.b16 %v450
    %v626 = vunpack.c.h.b16 %v450
    %v627 = vunpack.c.l.b16 %v451
    %v628 = vunpack.c.h.b16 %v451
    %v629 = vunpack.c.l.b16 %v452
    %v630 = vunpack.c.h.b16 %v452
    %v631 = vunpack.c.l.b16 %v453
    %v632 = vunpack.c.h.b16 %v453
    %v633 = vunpack.c.l.b16 %v454
    %v634 = vunpack.c.h.b16 %v454
    %v635 = vunpack.c.l.b16 %v455
    %v636 = vunpack.c.h.b16 %v455
    %v637 = vunpack.c.l.b16 %v456
    %v638 = vunpack.c.h.b16 %v456
    %v639 = vunpack.c.l.b16 %v457
    %v640 = vunpack.c.h.b16 %v457
    %v641 = vunpack.c.l.b16 %v458
    %v642 = vunpack.c.h.b16 %v458
    %v643 = vunpack.c.l.b16 %v459
    %v644 = vunpack.c.h.b16 %v459
    %v645 = vunpack.c.l.b16 %v460
    %v646 = vunpack.c.h.b16 %v460
    %v647 = vunpack.c.l.b16 %v461
    %v648 = vunpack.c.h.b16 %v461
    %v649 = vunpack.c.l.b16 %v462
    %v650 = vunpack.c.h.b16 %v462
    %v651 = vunpack.c.l.b16 %v463
    %v652 = vunpack.c.h.b16 %v463
    %v653 = vunpack.c.l.b16 %v464
    %v654 = vunpack.c.h.b16 %v464
    %v655 = vunpack.c.l.b16 %v465
    %v656 = vunpack.c.h.b16 %v465
    %v657 = vunpack.c.l.b16 %v466
    %v658 = vunpack.c.h.b16 %v466
    %v659 = vunpack.c.l.b16 %v467
    %v660 = vunpack.c.h.b16 %v467
    %v661 = vunpack.c.l.b16 %v468
    %v662 = vunpack.c.h.b16 %v468
    %v663 = vunpack.c.l.b16 %v469
    %v664 = vunpack.c.h.b16 %v469
    %v665 = vunpack.c.l.b16 %v470
    %v666 = vunpack.c.h.b16 %v470
    %v667 = vunpack.c.l.b16 %v471
    %v668 = vunpack.c.h.b16 %v471
    %v669 = vunpack.c.l.b16 %v472
    %v670 = vunpack.c.h.b16 %v472
    %v671 = vunpack.c.l.b16 %v473
    %v672 = vunpack.c.h.b16 %v473
    %v673 = vunpack.c.l.b16 %v474
    %v674 = vunpack.c.h.b16 %v474
    %v675 = vunpack.c.l.b16 %v475
    %v676 = vunpack.c.h.b16 %v475
    %v677 = vunpack.c.l.b16 %v476
    %v678 = vunpack.c.h.b16 %v476
    %v679 = vunpack.c.l.b16 %v477
    %v680 = vunpack.c.h.b16 %v477
    %v681 = vunpack.c.l.b16 %v478
    %v682 = vunpack.c.h.b16 %v478
    %v683 = vunpack.c.l.b16 %v479
    %v684 = vunpack.c.h.b16 %v479
    %v685 = vunpack.c.l.b16 %v480
    %v686 = vunpack.c.h.b16 %v480
    %v687 = vunpack.c.l.b16 %v481
    %v688 = vunpack.c.h.b16 %v481
    %v689 = vunpack.c.l.b16 %v482
    %v690 = vunpack.c.h.b16 %v482
    %v691 = vunpack.c.l.b16 %v483
    %v692 = vunpack.c.h.b16 %v483
    %v693 = vunpack.c.l.b16 %v484
    %v694 = vunpack.c.h.b16 %v484
    %v695 = vunpack.c.l.b16 %v485
    %v696 = vunpack.c.h.b16 %v485
    %v697 = vunpack.c.l.b16 %v486
    %v698 = vunpack.c.h.b16 %v486
    %v699 = vunpack.c.l.b16 %v487
    %v700 = vunpack.c.h.b16 %v487
    %v701 = vunpack.c.l.b16 %v488
    %v702 = vunpack.c.h.b16 %v488
    %v703 = vpack.c.b16 %v579, %v575
    %v704 = vpack.c.b16 %v580, %v576
    %v705 = vpack.c.b16 %v581, %v577
    %v706 = vpack.c.b16 %v582, %v578
    %v707 = vpack.c.b16 %v587, %v583
    %v708 = vpack.c.b16 %v588, %v584
    %v709 = vpack.c.b16 %v589, %v585
    %v710 = vpack.c.b16 %v590, %v586
    %v711 = vpack.c.b16 %v595, %v591
    %v712 = vpack.c.b16 %v596, %v592
    %v713 = vpack.c.b16 %v597, %v593
    %v714 = vpack.c.b16 %v598, %v594
    %v715 = vpack.c.b16 %v603, %v599
    %v716 = vpack.c.b16 %v604, %v600
    %v717 = vpack.c.b16 %v605, %v601
    %v718 = vpack.c.b16 %v606, %v602
    %v719 = vpack.c.b16 %v611, %v607
    %v720 = vpack.c.b16 %v612, %v608
    %v721 = vpack.c.b16 %v613, %v609
    %v722 = vpack.c.b16 %v614, %v610
    %v723 = vpack.c.b16 %v619, %v615
    %v724 = vpack.c.b16 %v620, %v616
    %v725 = vpack.c.b16 %v621, %v617
    %v726 = vpack.c.b16 %v622, %v618
    %v727 = vpack.c.b16 %v627, %v623
    %v728 = vpack.c.b16 %v628, %v624
    %v729 = vpack.c.b16 %v629, %v625
    %v730 = vpack.c.b16 %v630, %v626
    %v731 = vpack.c.b16 %v635, %v631
    %v732 = vpack.c.b16 %v636, %v632
    %v733 = vpack.c.b16 %v637, %v633
    %v734 = vpack.c.b16 %v638, %v634
    %v735 = vpack.c.b16 %v643, %v639
    %v736 = vpack.c.b16 %v644, %v640
    %v737 = vpack.c.b16 %v645, %v641
    %v738 = vpack.c.b16 %v646, %v642
    %v739 = vpack.c.b16 %v651, %v647
    %v740 = vpack.c.b16 %v652, %v648
    %v741 = vpack.c.b16 %v653, %v649
    %v742 = vpack.c.b16 %v654, %v650
    %v743 = vpack.c.b16 %v659, %v655
    %v744 = vpack.c.b16 %v660, %v656
    %v745 = vpack.c.b16 %v661, %v657
    %v746 = vpack.c.b16 %v662, %v658
    %v747 = vpack.c.b16 %v667, %v663
    %v748 = vpack.c.b16 %v668, %v664
    %v749 = vpack.c.b16 %v669, %v665
    %v750 = vpack.c.b16 %v670, %v666
    %v751 = vpack.c.b16 %v675, %v671
    %v752 = vpack.c.b16 %v676, %v672
    %v753 = vpack.c.b16 %v677, %v673
    %v754 = vpack.c.b16 %v678, %v674
    %v755 = vpack.c.b16 %v683, %v679
    %v756 = vpack.c.b16 %v684, %v680
    %v757 = vpack.c.b16 %v685, %v681
    %v758 = vpack.c.b16 %v686, %v682
    %v759 = vpack.c.b16 %v691, %v687
    %v760 = vpack.c.b16 %v692, %v688
    %v761 = vpack.c.b16 %v693, %v689
    %v762 = vpack.c.b16 %v694, %v690
    %v763 = vpack.c.b16 %v699, %v695
    %v764 = vpack.c.b16 %v700, %v696
    %v765 = vpack.c.b16 %v701, %v697
    %v766 = vpack.c.b16 %v702, %v698
    %831 = vmatprep.subr.bf16.mxu0 %v704
    %832 = vmatpush1.bf16.msra.mxu0 %v703
    %833 = vmatprep.subr.bf16.mxu0 %v708
    %834 = vmatpush1.bf16.msra.mxu0 %v707
    %835 = vmatprep.subr.bf16.mxu0 %v712
    %836 = vmatpush1.bf16.msra.mxu0 %v711
    %837 = vmatprep.subr.bf16.mxu0 %v716
    %838 = vmatpush1.bf16.msra.mxu0 %v715
    %839 = vmatprep.subr.bf16.mxu0 %v720
    %840 = vmatpush1.bf16.msra.mxu0 %v719
    %841 = vmatprep.subr.bf16.mxu0 %v724
    %842 = vmatpush1.bf16.msra.mxu0 %v723
    %843 = vmatprep.subr.bf16.mxu0 %v728
    %844 = vmatpush1.bf16.msra.mxu0 %v727
    %845 = vmatprep.subr.bf16.mxu0 %v732
    %846 = vmatpush1.bf16.msra.mxu0 %v731
    %847 = vmatprep.subr.bf16.mxu0 %v736
    %848 = vmatpush1.bf16.msra.mxu0 %v735
    %849 = vmatprep.subr.bf16.mxu0 %v740
    %850 = vmatpush1.bf16.msra.mxu0 %v739
    %851 = vmatprep.subr.bf16.mxu0 %v744
    %852 = vmatpush1.bf16.msra.mxu0 %v743
    %853 = vmatprep.subr.bf16.mxu0 %v748
    %854 = vmatpush1.bf16.msra.mxu0 %v747
    %855 = vmatprep.subr.bf16.mxu0 %v752
    %856 = vmatpush1.bf16.msra.mxu0 %v751
    %857 = vmatprep.subr.bf16.mxu0 %v756
    %858 = vmatpush1.bf16.msra.mxu0 %v755
    %859 = vmatprep.subr.bf16.mxu0 %v760
    %860 = vmatpush1.bf16.msra.mxu0 %v759
    %861 = vmatprep.subr.bf16.mxu0 %v764
    %862 = vmatpush1.bf16.msra.mxu0 %v763
    %863 = vmatprep.mubr.bf16.mxu0 %v424
    %864 = vmatmul.mubr.bf16.gmra.mrb[0].mxu0 %v423
    %v865 = vpop.f32.mrb[0].mxu0
    %v866 = vadd.f32 %v494, %v865
    %v867 = vpop.f32.mrb[0].mxu0
    %v868 = vadd.f32 %v498, %v867
    %v869 = vpop.f32.mrb[0].mxu0
    %v870 = vpop.f32.mrb[0].mxu0
    %871 = vdwg.mxu0
    %872 = vmatprep.subr.bf16.mxu0 %v706
    %873 = vmatpush1.bf16.msra.mxu0 %v705
    %874 = vmatprep.subr.bf16.mxu0 %v710
    %875 = vmatpush1.bf16.msra.mxu0 %v709
    %876 = vmatprep.subr.bf16.mxu0 %v714
    %877 = vmatpush1.bf16.msra.mxu0 %v713
    %878 = vmatprep.subr.bf16.mxu0 %v718
    %879 = vmatpush1.bf16.msra.mxu0 %v717
    %880 = vmatprep.subr.bf16.mxu0 %v722
    %881 = vmatpush1.bf16.msra.mxu0 %v721
    %882 = vmatprep.subr.bf16.mxu0 %v726
    %883 = vmatpush1.bf16.msra.mxu0 %v725
    %884 = vmatprep.subr.bf16.mxu0 %v730
    %885 = vmatpush1.bf16.msra.mxu0 %v729
    %886 = vmatprep.subr.bf16.mxu0 %v734
    %887 = vmatpush1.bf16.msra.mxu0 %v733
    %888 = vmatprep.subr.bf16.mxu0 %v738
    %889 = vmatpush1.bf16.msra.mxu0 %v737
    %890 = vmatprep.subr.bf16.mxu0 %v742
    %891 = vmatpush1.bf16.msra.mxu0 %v741
    %892 = vmatprep.subr.bf16.mxu0 %v746
    %893 = vmatpush1.bf16.msra.mxu0 %v745
    %894 = vmatprep.subr.bf16.mxu0 %v750
    %895 = vmatpush1.bf16.msra.mxu0 %v749
    %896 = vmatprep.subr.bf16.mxu0 %v754
    %897 = vmatpush1.bf16.msra.mxu0 %v753
    %898 = vmatprep.subr.bf16.mxu0 %v758
    %899 = vmatpush1.bf16.msra.mxu0 %v757
    %900 = vmatprep.subr.bf16.mxu0 %v762
    %901 = vmatpush1.bf16.msra.mxu0 %v761
    %902 = vmatprep.subr.bf16.mxu0 %v766
    %903 = vmatpush1.bf16.msra.mxu0 %v765
    %904 = vmatprep.mubr.bf16.mxu0 %v424
    %905 = vmatmul.mubr.bf16.gmra.mrb[0].mxu0 %v423
    %v906 = vpop.f32.mrb[0].mxu0
    %v907 = vadd.f32 %v502, %v906
    %v908 = vpop.f32.mrb[0].mxu0
    %v909 = vadd.f32 %v506, %v908
    %v910 = vpop.f32.mrb[0].mxu0
    %v911 = vpop.f32.mrb[0].mxu0
    %912 = vdwg.mxu0
    %v913 = vmax.f32 %v866, 0.0
    %v914 = vmax.f32 %v868, 0.0
    %v915 = vmax.f32 %v907, 0.0
    %v916 = vmax.f32 %v909, 0.0
    %v917 = vpack.c.bf16 %v913, %v913
    %v918 = vpack.c.bf16 %v914, %v914
    %v919 = vpack.c.bf16 %v915, %v915
    %v920 = vpack.c.bf16 %v916, %v916
    %v921 = vld [vmem:[#allocation7] sm:$0xff]
    %v922 = vld [vmem:[#allocation7 + $0x8] sm:$0xff]
    %v923 = vld [vmem:[#allocation7 + $0x10] sm:$0xff]
    %v924 = vld [vmem:[#allocation7 + $0x18] sm:$0xff]
    %v925 = vld [vmem:[#allocation7 + $0x20] sm:$0xff]
    %v926 = vld [vmem:[#allocation7 + $0x28] sm:$0xff]
    %v927 = vld [vmem:[#allocation7 + $0x30] sm:$0xff]
    %v928 = vld [vmem:[#allocation7 + $0x38] sm:$0xff]
    %v929 = vld [vmem:[#allocation7 + $0x40] sm:$0xff]
    %v930 = vld [vmem:[#allocation7 + $0x48] sm:$0xff]
    %v931 = vld [vmem:[#allocation7 + $0x50] sm:$0xff]
    %v932 = vld [vmem:[#allocation7 + $0x58] sm:$0xff]
    %v933 = vld [vmem:[#allocation7 + $0x60] sm:$0xff]
    %v934 = vld [vmem:[#allocation7 + $0x68] sm:$0xff]
    %v935 = vld [vmem:[#allocation7 + $0x70] sm:$0xff]
    %v936 = vld [vmem:[#allocation7 + $0x78] sm:$0xff]
    %v937 = vld [vmem:[#allocation7 + $0x80] sm:$0xff]
    %v938 = vld [vmem:[#allocation7 + $0x88] sm:$0xff]
    %v939 = vld [vmem:[#allocation7 + $0x90] sm:$0xff]
    %v940 = vld [vmem:[#allocation7 + $0x98] sm:$0xff]
    %v941 = vld [vmem:[#allocation7 + $0xa0] sm:$0xff]
    %v942 = vld [vmem:[#allocation7 + $0xa8] sm:$0xff]
    %v943 = vld [vmem:[#allocation7 + $0xb0] sm:$0xff]
    %v944 = vld [vmem:[#allocation7 + $0xb8] sm:$0xff]
    %v945 = vld [vmem:[#allocation7 + $0xc0] sm:$0xff]
    %v946 = vld [vmem:[#allocation7 + $0xc8] sm:$0xff]
    %v947 = vld [vmem:[#allocation7 + $0xd0] sm:$0xff]
    %v948 = vld [vmem:[#allocation7 + $0xd8] sm:$0xff]
    %v949 = vld [vmem:[#allocation7 + $0xe0] sm:$0xff]
    %v950 = vld [vmem:[#allocation7 + $0xe8] sm:$0xff]
    %v951 = vld [vmem:[#allocation7 + $0xf0] sm:$0xff]
    %v952 = vld [vmem:[#allocation7 + $0xf8] sm:$0xff]
    %v953 = vld [vmem:[#allocation7 + $0x100] sm:$0xff]
    %v954 = vld [vmem:[#allocation7 + $0x108] sm:$0xff]
    %v955 = vld [vmem:[#allocation7 + $0x110] sm:$0xff]
    %v956 = vld [vmem:[#allocation7 + $0x118] sm:$0xff]
    %v957 = vld [vmem:[#allocation7 + $0x120] sm:$0xff]
    %v958 = vld [vmem:[#allocation7 + $0x128] sm:$0xff]
    %v959 = vld [vmem:[#allocation7 + $0x130] sm:$0xff]
    %v960 = vld [vmem:[#allocation7 + $0x138] sm:$0xff]
    %v961 = vld [vmem:[#allocation7 + $0x140] sm:$0xff]
    %v962 = vld [vmem:[#allocation7 + $0x148] sm:$0xff]
    %v963 = vld [vmem:[#allocation7 + $0x150] sm:$0xff]
    %v964 = vld [vmem:[#allocation7 + $0x158] sm:$0xff]
    %v965 = vld [vmem:[#allocation7 + $0x160] sm:$0xff]
    %v966 = vld [vmem:[#allocation7 + $0x168] sm:$0xff]
    %v967 = vld [vmem:[#allocation7 + $0x170] sm:$0xff]
    %v968 = vld [vmem:[#allocation7 + $0x178] sm:$0xff]
    %v969 = vld [vmem:[#allocation7 + $0x180] sm:$0xff]
    %v970 = vld [vmem:[#allocation7 + $0x188] sm:$0xff]
    %v971 = vld [vmem:[#allocation7 + $0x190] sm:$0xff]
    %v972 = vld [vmem:[#allocation7 + $0x198] sm:$0xff]
    %v973 = vld [vmem:[#allocation7 + $0x1a0] sm:$0xff]
    %v974 = vld [vmem:[#allocation7 + $0x1a8] sm:$0xff]
    %v975 = vld [vmem:[#allocation7 + $0x1b0] sm:$0xff]
    %v976 = vld [vmem:[#allocation7 + $0x1b8] sm:$0xff]
    %v977 = vld [vmem:[#allocation7 + $0x1c0] sm:$0xff]
    %v978 = vld [vmem:[#allocation7 + $0x1c8] sm:$0xff]
    %v979 = vld [vmem:[#allocation7 + $0x1d0] sm:$0xff]
    %v980 = vld [vmem:[#allocation7 + $0x1d8] sm:$0xff]
    %v981 = vld [vmem:[#allocation7 + $0x1e0] sm:$0xff]
    %v982 = vld [vmem:[#allocation7 + $0x1e8] sm:$0xff]
    %v983 = vld [vmem:[#allocation7 + $0x1f0] sm:$0xff]
    %v984 = vld [vmem:[#allocation7 + $0x1f8] sm:$0xff]
    %v985 = vld [vmem:[#allocation7 + $0x200] sm:$0xff]
    %v986 = vld [vmem:[#allocation7 + $0x208] sm:$0xff]
    %v987 = vld [vmem:[#allocation7 + $0x210] sm:$0xff]
    %v988 = vld [vmem:[#allocation7 + $0x218] sm:$0xff]
    %v989 = vld [vmem:[#allocation7 + $0x220] sm:$0xff]
    %v990 = vld [vmem:[#allocation7 + $0x228] sm:$0xff]
    %v991 = vld [vmem:[#allocation7 + $0x230] sm:$0xff]
    %v992 = vld [vmem:[#allocation7 + $0x238] sm:$0xff]
    %v993 = vld [vmem:[#allocation7 + $0x240] sm:$0xff]
    %v994 = vld [vmem:[#allocation7 + $0x248] sm:$0xff]
    %v995 = vld [vmem:[#allocation7 + $0x250] sm:$0xff]
    %v996 = vld [vmem:[#allocation7 + $0x258] sm:$0xff]
    %v997 = vld [vmem:[#allocation7 + $0x260] sm:$0xff]
    %v998 = vld [vmem:[#allocation7 + $0x268] sm:$0xff]
    %v999 = vld [vmem:[#allocation7 + $0x270] sm:$0xff]
    %v1000 = vld [vmem:[#allocation7 + $0x278] sm:$0xff]
    %v1001 = vld [vmem:[#allocation7 + $0x280] sm:$0xff]
    %v1002 = vld [vmem:[#allocation7 + $0x288] sm:$0xff]
    %v1003 = vld [vmem:[#allocation7 + $0x290] sm:$0xff]
    %v1004 = vld [vmem:[#allocation7 + $0x298] sm:$0xff]
    %v1005 = vld [vmem:[#allocation7 + $0x2a0] sm:$0xff]
    %v1006 = vld [vmem:[#allocation7 + $0x2a8] sm:$0xff]
    %v1007 = vld [vmem:[#allocation7 + $0x2b0] sm:$0xff]
    %v1008 = vld [vmem:[#allocation7 + $0x2b8] sm:$0xff]
    %v1009 = vld [vmem:[#allocation7 + $0x2c0] sm:$0xff]
    %v1010 = vld [vmem:[#allocation7 + $0x2c8] sm:$0xff]
    %v1011 = vld [vmem:[#allocation7 + $0x2d0] sm:$0xff]
    %v1012 = vld [vmem:[#allocation7 + $0x2d8] sm:$0xff]
    %v1013 = vld [vmem:[#allocation7 + $0x2e0] sm:$0xff]
    %v1014 = vld [vmem:[#allocation7 + $0x2e8] sm:$0xff]
    %v1015 = vld [vmem:[#allocation7 + $0x2f0] sm:$0xff]
    %v1016 = vld [vmem:[#allocation7 + $0x2f8] sm:$0xff]
    %v1017 = vld [vmem:[#allocation7 + $0x300] sm:$0xff]
    %v1018 = vld [vmem:[#allocation7 + $0x308] sm:$0xff]
    %v1019 = vld [vmem:[#allocation7 + $0x310] sm:$0xff]
    %v1020 = vld [vmem:[#allocation7 + $0x318] sm:$0xff]
    %v1021 = vld [vmem:[#allocation7 + $0x320] sm:$0xff]
    %v1022 = vld [vmem:[#allocation7 + $0x328] sm:$0xff]
    %v1023 = vld [vmem:[#allocation7 + $0x330] sm:$0xff]
    %v1024 = vld [vmem:[#allocation7 + $0x338] sm:$0xff]
    %v1025 = vld [vmem:[#allocation7 + $0x340] sm:$0xff]
    %v1026 = vld [vmem:[#allocation7 + $0x348] sm:$0xff]
    %v1027 = vld [vmem:[#allocation7 + $0x350] sm:$0xff]
    %v1028 = vld [vmem:[#allocation7 + $0x358] sm:$0xff]
    %v1029 = vld [vmem:[#allocation7 + $0x360] sm:$0xff]
    %v1030 = vld [vmem:[#allocation7 + $0x368] sm:$0xff]
    %v1031 = vld [vmem:[#allocation7 + $0x370] sm:$0xff]
    %v1032 = vld [vmem:[#allocation7 + $0x378] sm:$0xff]
    %v1033 = vld [vmem:[#allocation7 + $0x380] sm:$0xff]
    %v1034 = vld [vmem:[#allocation7 + $0x388] sm:$0xff]
    %v1035 = vld [vmem:[#allocation7 + $0x390] sm:$0xff]
    %v1036 = vld [vmem:[#allocation7 + $0x398] sm:$0xff]
    %v1037 = vld [vmem:[#allocation7 + $0x3a0] sm:$0xff]
    %v1038 = vld [vmem:[#allocation7 + $0x3a8] sm:$0xff]
    %v1039 = vld [vmem:[#allocation7 + $0x3b0] sm:$0xff]
    %v1040 = vld [vmem:[#allocation7 + $0x3b8] sm:$0xff]
    %v1041 = vld [vmem:[#allocation7 + $0x3c0] sm:$0xff]
    %v1042 = vld [vmem:[#allocation7 + $0x3c8] sm:$0xff]
    %v1043 = vld [vmem:[#allocation7 + $0x3d0] sm:$0xff]
    %v1044 = vld [vmem:[#allocation7 + $0x3d8] sm:$0xff]
    %v1045 = vld [vmem:[#allocation7 + $0x3e0] sm:$0xff]
    %v1046 = vld [vmem:[#allocation7 + $0x3e8] sm:$0xff]
    %v1047 = vld [vmem:[#allocation7 + $0x3f0] sm:$0xff]
    %v1048 = vld [vmem:[#allocation7 + $0x3f8] sm:$0xff]
    %v1049 = vld [vmem:[%s8] sm:$0xf]
    %v1051 = vlaneseq
    %v1052 = vshrl.u32 %v1051, 7
    %v1053 = vsub.s32 0, %v1052
    %v1054 = vrot.slane %v1049, %v1053
    %v1055 = vlaneseq
    %v1056 = vshrl.u32 %v1055, 7
    %v1057 = vsub.s32 1, %v1056
    %v1058 = vrot.slane %v1049, %v1057
    %v1059 = vlaneseq
    %v1060 = vshrl.u32 %v1059, 7
    %v1061 = vsub.s32 2, %v1060
    %v1062 = vrot.slane %v1049, %v1061
    %v1063 = vlaneseq
    %v1064 = vshrl.u32 %v1063, 7
    %v1065 = vsub.s32 3, %v1064
    %v1066 = vrot.slane %v1049, %v1065
    %v1199 = vunpack.c.l.b16 %v921
    %v1200 = vunpack.c.h.b16 %v921
    %v1201 = vunpack.c.l.b16 %v922
    %v1202 = vunpack.c.h.b16 %v922
    %v1203 = vunpack.c.l.b16 %v923
    %v1204 = vunpack.c.h.b16 %v923
    %v1205 = vunpack.c.l.b16 %v924
    %v1206 = vunpack.c.h.b16 %v924
    %v1207 = vunpack.c.l.b16 %v925
    %v1208 = vunpack.c.h.b16 %v925
    %v1209 = vunpack.c.l.b16 %v926
    %v1210 = vunpack.c.h.b16 %v926
    %v1211 = vunpack.c.l.b16 %v927
    %v1212 = vunpack.c.h.b16 %v927
    %v1213 = vunpack.c.l.b16 %v928
    %v1214 = vunpack.c.h.b16 %v928
    %v1215 = vunpack.c.l.b16 %v929
    %v1216 = vunpack.c.h.b16 %v929
    %v1217 = vunpack.c.l.b16 %v930
    %v1218 = vunpack.c.h.b16 %v930
    %v1219 = vunpack.c.l.b16 %v931
    %v1220 = vunpack.c.h.b16 %v931
    %v1221 = vunpack.c.l.b16 %v932
    %v1222 = vunpack.c.h.b16 %v932
    %v1223 = vunpack.c.l.b16 %v933
    %v1224 = vunpack.c.h.b16 %v933
    %v1225 = vunpack.c.l.b16 %v934
    %v1226 = vunpack.c.h.b16 %v934
    %v1227 = vunpack.c.l.b16 %v935
    %v1228 = vunpack.c.h.b16 %v935
    %v1229 = vunpack.c.l.b16 %v936
    %v1230 = vunpack.c.h.b16 %v936
    %v1231 = vunpack.c.l.b16 %v937
    %v1232 = vunpack.c.h.b16 %v937
    %v1233 = vunpack.c.l.b16 %v938
    %v1234 = vunpack.c.h.b16 %v938
    %v1235 = vunpack.c.l.b16 %v939
    %v1236 = vunpack.c.h.b16 %v939
    %v1237 = vunpack.c.l.b16 %v940
    %v1238 = vunpack.c.h.b16 %v940
    %v1239 = vunpack.c.l.b16 %v941
    %v1240 = vunpack.c.h.b16 %v941
    %v1241 = vunpack.c.l.b16 %v942
    %v1242 = vunpack.c.h.b16 %v942
    %v1243 = vunpack.c.l.b16 %v943
    %v1244 = vunpack.c.h.b16 %v943
    %v1245 = vunpack.c.l.b16 %v944
    %v1246 = vunpack.c.h.b16 %v944
    %v1247 = vunpack.c.l.b16 %v945
    %v1248 = vunpack.c.h.b16 %v945
    %v1249 = vunpack.c.l.b16 %v946
    %v1250 = vunpack.c.h.b16 %v946
    %v1251 = vunpack.c.l.b16 %v947
    %v1252 = vunpack.c.h.b16 %v947
    %v1253 = vunpack.c.l.b16 %v948
    %v1254 = vunpack.c.h.b16 %v948
    %v1255 = vunpack.c.l.b16 %v949
    %v1256 = vunpack.c.h.b16 %v949
    %v1257 = vunpack.c.l.b16 %v950
    %v1258 = vunpack.c.h.b16 %v950
    %v1259 = vunpack.c.l.b16 %v951
    %v1260 = vunpack.c.h.b16 %v951
    %v1261 = vunpack.c.l.b16 %v952
    %v1262 = vunpack.c.h.b16 %v952
    %v1263 = vunpack.c.l.b16 %v953
    %v1264 = vunpack.c.h.b16 %v953
    %v1265 = vunpack.c.l.b16 %v954
    %v1266 = vunpack.c.h.b16 %v954
    %v1267 = vunpack.c.l.b16 %v955
    %v1268 = vunpack.c.h.b16 %v955
    %v1269 = vunpack.c.l.b16 %v956
    %v1270 = vunpack.c.h.b16 %v956
    %v1271 = vunpack.c.l.b16 %v957
    %v1272 = vunpack.c.h.b16 %v957
    %v1273 = vunpack.c.l.b16 %v958
    %v1274 = vunpack.c.h.b16 %v958
    %v1275 = vunpack.c.l.b16 %v959
    %v1276 = vunpack.c.h.b16 %v959
    %v1277 = vunpack.c.l.b16 %v960
    %v1278 = vunpack.c.h.b16 %v960
    %v1279 = vunpack.c.l.b16 %v961
    %v1280 = vunpack.c.h.b16 %v961
    %v1281 = vunpack.c.l.b16 %v962
    %v1282 = vunpack.c.h.b16 %v962
    %v1283 = vunpack.c.l.b16 %v963
    %v1284 = vunpack.c.h.b16 %v963
    %v1285 = vunpack.c.l.b16 %v964
    %v1286 = vunpack.c.h.b16 %v964
    %v1287 = vunpack.c.l.b16 %v965
    %v1288 = vunpack.c.h.b16 %v965
    %v1289 = vunpack.c.l.b16 %v966
    %v1290 = vunpack.c.h.b16 %v966
    %v1291 = vunpack.c.l.b16 %v967
    %v1292 = vunpack.c.h.b16 %v967
    %v1293 = vunpack.c.l.b16 %v968
    %v1294 = vunpack.c.h.b16 %v968
    %v1295 = vunpack.c.l.b16 %v969
    %v1296 = vunpack.c.h.b16 %v969
    %v1297 = vunpack.c.l.b16 %v970
    %v1298 = vunpack.c.h.b16 %v970
    %v1299 = vunpack.c.l.b16 %v971
    %v1300 = vunpack.c.h.b16 %v971
    %v1301 = vunpack.c.l.b16 %v972
    %v1302 = vunpack.c.h.b16 %v972
    %v1303 = vunpack.c.l.b16 %v973
    %v1304 = vunpack.c.h.b16 %v973
    %v1305 = vunpack.c.l.b16 %v974
    %v1306 = vunpack.c.h.b16 %v974
    %v1307 = vunpack.c.l.b16 %v975
    %v1308 = vunpack.c.h.b16 %v975
    %v1309 = vunpack.c.l.b16 %v976
    %v1310 = vunpack.c.h.b16 %v976
    %v1311 = vunpack.c.l.b16 %v977
    %v1312 = vunpack.c.h.b16 %v977
    %v1313 = vunpack.c.l.b16 %v978
    %v1314 = vunpack.c.h.b16 %v978
    %v1315 = vunpack.c.l.b16 %v979
    %v1316 = vunpack.c.h.b16 %v979
    %v1317 = vunpack.c.l.b16 %v980
    %v1318 = vunpack.c.h.b16 %v980
    %v1319 = vunpack.c.l.b16 %v981
    %v1320 = vunpack.c.h.b16 %v981
    %v1321 = vunpack.c.l.b16 %v982
    %v1322 = vunpack.c.h.b16 %v982
    %v1323 = vunpack.c.l.b16 %v983
    %v1324 = vunpack.c.h.b16 %v983
    %v1325 = vunpack.c.l.b16 %v984
    %v1326 = vunpack.c.h.b16 %v984
    %v1327 = vunpack.c.l.b16 %v985
    %v1328 = vunpack.c.h.b16 %v985
    %v1329 = vunpack.c.l.b16 %v986
    %v1330 = vunpack.c.h.b16 %v986
    %v1331 = vunpack.c.l.b16 %v987
    %v1332 = vunpack.c.h.b16 %v987
    %v1333 = vunpack.c.l.b16 %v988
    %v1334 = vunpack.c.h.b16 %v988
    %v1335 = vunpack.c.l.b16 %v989
    %v1336 = vunpack.c.h.b16 %v989
    %v1337 = vunpack.c.l.b16 %v990
    %v1338 = vunpack.c.h.b16 %v990
    %v1339 = vunpack.c.l.b16 %v991
    %v1340 = vunpack.c.h.b16 %v991
    %v1341 = vunpack.c.l.b16 %v992
    %v1342 = vunpack.c.h.b16 %v992
    %v1343 = vunpack.c.l.b16 %v993
    %v1344 = vunpack.c.h.b16 %v993
    %v1345 = vunpack.c.l.b16 %v994
    %v1346 = vunpack.c.h.b16 %v994
    %v1347 = vunpack.c.l.b16 %v995
    %v1348 = vunpack.c.h.b16 %v995
    %v1349 = vunpack.c.l.b16 %v996
    %v1350 = vunpack.c.h.b16 %v996
    %v1351 = vunpack.c.l.b16 %v997
    %v1352 = vunpack.c.h.b16 %v997
    %v1353 = vunpack.c.l.b16 %v998
    %v1354 = vunpack.c.h.b16 %v998
    %v1355 = vunpack.c.l.b16 %v999
    %v1356 = vunpack.c.h.b16 %v999
    %v1357 = vunpack.c.l.b16 %v1000
    %v1358 = vunpack.c.h.b16 %v1000
    %v1359 = vunpack.c.l.b16 %v1001
    %v1360 = vunpack.c.h.b16 %v1001
    %v1361 = vunpack.c.l.b16 %v1002
    %v1362 = vunpack.c.h.b16 %v1002
    %v1363 = vunpack.c.l.b16 %v1003
    %v1364 = vunpack.c.h.b16 %v1003
    %v1365 = vunpack.c.l.b16 %v1004
    %v1366 = vunpack.c.h.b16 %v1004
    %v1367 = vunpack.c.l.b16 %v1005
    %v1368 = vunpack.c.h.b16 %v1005
    %v1369 = vunpack.c.l.b16 %v1006
    %v1370 = vunpack.c.h.b16 %v1006
    %v1371 = vunpack.c.l.b16 %v1007
    %v1372 = vunpack.c.h.b16 %v1007
    %v1373 = vunpack.c.l.b16 %v1008
    %v1374 = vunpack.c.h.b16 %v1008
    %v1375 = vunpack.c.l.b16 %v1009
    %v1376 = vunpack.c.h.b16 %v1009
    %v1377 = vunpack.c.l.b16 %v1010
    %v1378 = vunpack.c.h.b16 %v1010
    %v1379 = vunpack.c.l.b16 %v1011
    %v1380 = vunpack.c.h.b16 %v1011
    %v1381 = vunpack.c.l.b16 %v1012
    %v1382 = vunpack.c.h.b16 %v1012
    %v1383 = vunpack.c.l.b16 %v1013
    %v1384 = vunpack.c.h.b16 %v1013
    %v1385 = vunpack.c.l.b16 %v1014
    %v1386 = vunpack.c.h.b16 %v1014
    %v1387 = vunpack.c.l.b16 %v1015
    %v1388 = vunpack.c.h.b16 %v1015
    %v1389 = vunpack.c.l.b16 %v1016
    %v1390 = vunpack.c.h.b16 %v1016
    %v1391 = vunpack.c.l.b16 %v1017
    %v1392 = vunpack.c.h.b16 %v1017
    %v1393 = vunpack.c.l.b16 %v1018
    %v1394 = vunpack.c.h.b16 %v1018
    %v1395 = vunpack.c.l.b16 %v1019
    %v1396 = vunpack.c.h.b16 %v1019
    %v1397 = vunpack.c.l.b16 %v1020
    %v1398 = vunpack.c.h.b16 %v1020
    %v1399 = vunpack.c.l.b16 %v1021
    %v1400 = vunpack.c.h.b16 %v1021
    %v1401 = vunpack.c.l.b16 %v1022
    %v1402 = vunpack.c.h.b16 %v1022
    %v1403 = vunpack.c.l.b16 %v1023
    %v1404 = vunpack.c.h.b16 %v1023
    %v1405 = vunpack.c.l.b16 %v1024
    %v1406 = vunpack.c.h.b16 %v1024
    %v1407 = vunpack.c.l.b16 %v1025
    %v1408 = vunpack.c.h.b16 %v1025
    %v1409 = vunpack.c.l.b16 %v1026
    %v1410 = vunpack.c.h.b16 %v1026
    %v1411 = vunpack.c.l.b16 %v1027
    %v1412 = vunpack.c.h.b16 %v1027
    %v1413 = vunpack.c.l.b16 %v1028
    %v1414 = vunpack.c.h.b16 %v1028
    %v1415 = vunpack.c.l.b16 %v1029
    %v1416 = vunpack.c.h.b16 %v1029
    %v1417 = vunpack.c.l.b16 %v1030
    %v1418 = vunpack.c.h.b16 %v1030
    %v1419 = vunpack.c.l.b16 %v1031
    %v1420 = vunpack.c.h.b16 %v1031
    %v1421 = vunpack.c.l.b16 %v1032
    %v1422 = vunpack.c.h.b16 %v1032
    %v1423 = vunpack.c.l.b16 %v1033
    %v1424 = vunpack.c.h.b16 %v1033
    %v1425 = vunpack.c.l.b16 %v1034
    %v1426 = vunpack.c.h.b16 %v1034
    %v1427 = vunpack.c.l.b16 %v1035
    %v1428 = vunpack.c.h.b16 %v1035
    %v1429 = vunpack.c.l.b16 %v1036
    %v1430 = vunpack.c.h.b16 %v1036
    %v1431 = vunpack.c.l.b16 %v1037
    %v1432 = vunpack.c.h.b16 %v1037
    %v1433 = vunpack.c.l.b16 %v1038
    %v1434 = vunpack.c.h.b16 %v1038
    %v1435 = vunpack.c.l.b16 %v1039
    %v1436 = vunpack.c.h.b16 %v1039
    %v1437 = vunpack.c.l.b16 %v1040
    %v1438 = vunpack.c.h.b16 %v1040
    %v1439 = vunpack.c.l.b16 %v1041
    %v1440 = vunpack.c.h.b16 %v1041
    %v1441 = vunpack.c.l.b16 %v1042
    %v1442 = vunpack.c.h.b16 %v1042
    %v1443 = vunpack.c.l.b16 %v1043
    %v1444 = vunpack.c.h.b16 %v1043
    %v1445 = vunpack.c.l.b16 %v1044
    %v1446 = vunpack.c.h.b16 %v1044
    %v1447 = vunpack.c.l.b16 %v1045
    %v1448 = vunpack.c.h.b16 %v1045
    %v1449 = vunpack.c.l.b16 %v1046
    %v1450 = vunpack.c.h.b16 %v1046
    %v1451 = vunpack.c.l.b16 %v1047
    %v1452 = vunpack.c.h.b16 %v1047
    %v1453 = vunpack.c.l.b16 %v1048
    %v1454 = vunpack.c.h.b16 %v1048
    %v1455 = vpack.c.b16 %v1203, %v1199
    %v1456 = vpack.c.b16 %v1204, %v1200
    %v1457 = vpack.c.b16 %v1205, %v1201
    %v1458 = vpack.c.b16 %v1206, %v1202
    %v1459 = vpack.c.b16 %v1211, %v1207
    %v1460 = vpack.c.b16 %v1212, %v1208
    %v1461 = vpack.c.b16 %v1213, %v1209
    %v1462 = vpack.c.b16 %v1214, %v1210
    %v1463 = vpack.c.b16 %v1219, %v1215
    %v1464 = vpack.c.b16 %v1220, %v1216
    %v1465 = vpack.c.b16 %v1221, %v1217
    %v1466 = vpack.c.b16 %v1222, %v1218
    %v1467 = vpack.c.b16 %v1227, %v1223
    %v1468 = vpack.c.b16 %v1228, %v1224
    %v1469 = vpack.c.b16 %v1229, %v1225
    %v1470 = vpack.c.b16 %v1230, %v1226
    %v1471 = vpack.c.b16 %v1235, %v1231
    %v1472 = vpack.c.b16 %v1236, %v1232
    %v1473 = vpack.c.b16 %v1237, %v1233
    %v1474 = vpack.c.b16 %v1238, %v1234
    %v1475 = vpack.c.b16 %v1243, %v1239
    %v1476 = vpack.c.b16 %v1244, %v1240
    %v1477 = vpack.c.b16 %v1245, %v1241
    %v1478 = vpack.c.b16 %v1246, %v1242
    %v1479 = vpack.c.b16 %v1251, %v1247
    %v1480 = vpack.c.b16 %v1252, %v1248
    %v1481 = vpack.c.b16 %v1253, %v1249
    %v1482 = vpack.c.b16 %v1254, %v1250
    %v1483 = vpack.c.b16 %v1259, %v1255
    %v1484 = vpack.c.b16 %v1260, %v1256
    %v1485 = vpack.c.b16 %v1261, %v1257
    %v1486 = vpack.c.b16 %v1262, %v1258
    %v1487 = vpack.c.b16 %v1267, %v1263
    %v1488 = vpack.c.b16 %v1268, %v1264
    %v1489 = vpack.c.b16 %v1269, %v1265
    %v1490 = vpack.c.b16 %v1270, %v1266
    %v1491 = vpack.c.b16 %v1275, %v1271
    %v1492 = vpack.c.b16 %v1276, %v1272
    %v1493 = vpack.c.b16 %v1277, %v1273
    %v1494 = vpack.c.b16 %v1278, %v1274
    %v1495 = vpack.c.b16 %v1283, %v1279
    %v1496 = vpack.c.b16 %v1284, %v1280
    %v1497 = vpack.c.b16 %v1285, %v1281
    %v1498 = vpack.c.b16 %v1286, %v1282
    %v1499 = vpack.c.b16 %v1291, %v1287
    %v1500 = vpack.c.b16 %v1292, %v1288
    %v1501 = vpack.c.b16 %v1293, %v1289
    %v1502 = vpack.c.b16 %v1294, %v1290
    %v1503 = vpack.c.b16 %v1299, %v1295
    %v1504 = vpack.c.b16 %v1300, %v1296
    %v1505 = vpack.c.b16 %v1301, %v1297
    %v1506 = vpack.c.b16 %v1302, %v1298
    %v1507 = vpack.c.b16 %v1307, %v1303
    %v1508 = vpack.c.b16 %v1308, %v1304
    %v1509 = vpack.c.b16 %v1309, %v1305
    %v1510 = vpack.c.b16 %v1310, %v1306
    %v1511 = vpack.c.b16 %v1315, %v1311
    %v1512 = vpack.c.b16 %v1316, %v1312
    %v1513 = vpack.c.b16 %v1317, %v1313
    %v1514 = vpack.c.b16 %v1318, %v1314
    %v1515 = vpack.c.b16 %v1323, %v1319
    %v1516 = vpack.c.b16 %v1324, %v1320
    %v1517 = vpack.c.b16 %v1325, %v1321
    %v1518 = vpack.c.b16 %v1326, %v1322
    %v1519 = vpack.c.b16 %v1331, %v1327
    %v1520 = vpack.c.b16 %v1332, %v1328
    %v1521 = vpack.c.b16 %v1333, %v1329
    %v1522 = vpack.c.b16 %v1334, %v1330
    %v1523 = vpack.c.b16 %v1339, %v1335
    %v1524 = vpack.c.b16 %v1340, %v1336
    %v1525 = vpack.c.b16 %v1341, %v1337
    %v1526 = vpack.c.b16 %v1342, %v1338
    %v1527 = vpack.c.b16 %v1347, %v1343
    %v1528 = vpack.c.b16 %v1348, %v1344
    %v1529 = vpack.c.b16 %v1349, %v1345
    %v1530 = vpack.c.b16 %v1350, %v1346
    %v1531 = vpack.c.b16 %v1355, %v1351
    %v1532 = vpack.c.b16 %v1356, %v1352
    %v1533 = vpack.c.b16 %v1357, %v1353
    %v1534 = vpack.c.b16 %v1358, %v1354
    %v1535 = vpack.c.b16 %v1363, %v1359
    %v1536 = vpack.c.b16 %v1364, %v1360
    %v1537 = vpack.c.b16 %v1365, %v1361
    %v1538 = vpack.c.b16 %v1366, %v1362
    %v1539 = vpack.c.b16 %v1371, %v1367
    %v1540 = vpack.c.b16 %v1372, %v1368
    %v1541 = vpack.c.b16 %v1373, %v1369
    %v1542 = vpack.c.b16 %v1374, %v1370
    %v1543 = vpack.c.b16 %v1379, %v1375
    %v1544 = vpack.c.b16 %v1380, %v1376
    %v1545 = vpack.c.b16 %v1381, %v1377
    %v1546 = vpack.c.b16 %v1382, %v1378
    %v1547 = vpack.c.b16 %v1387, %v1383
    %v1548 = vpack.c.b16 %v1388, %v1384
    %v1549 = vpack.c.b16 %v1389, %v1385
    %v1550 = vpack.c.b16 %v1390, %v1386
    %v1551 = vpack.c.b16 %v1395, %v1391
    %v1552 = vpack.c.b16 %v1396, %v1392
    %v1553 = vpack.c.b16 %v1397, %v1393
    %v1554 = vpack.c.b16 %v1398, %v1394
    %v1555 = vpack.c.b16 %v1403, %v1399
    %v1556 = vpack.c.b16 %v1404, %v1400
    %v1557 = vpack.c.b16 %v1405, %v1401
    %v1558 = vpack.c.b16 %v1406, %v1402
    %v1559 = vpack.c.b16 %v1411, %v1407
    %v1560 = vpack.c.b16 %v1412, %v1408
    %v1561 = vpack.c.b16 %v1413, %v1409
    %v1562 = vpack.c.b16 %v1414, %v1410
    %v1563 = vpack.c.b16 %v1419, %v1415
    %v1564 = vpack.c.b16 %v1420, %v1416
    %v1565 = vpack.c.b16 %v1421, %v1417
    %v1566 = vpack.c.b16 %v1422, %v1418
    %v1567 = vpack.c.b16 %v1427, %v1423
    %v1568 = vpack.c.b16 %v1428, %v1424
    %v1569 = vpack.c.b16 %v1429, %v1425
    %v1570 = vpack.c.b16 %v1430, %v1426
    %v1571 = vpack.c.b16 %v1435, %v1431
    %v1572 = vpack.c.b16 %v1436, %v1432
    %v1573 = vpack.c.b16 %v1437, %v1433
    %v1574 = vpack.c.b16 %v1438, %v1434
    %v1575 = vpack.c.b16 %v1443, %v1439
    %v1576 = vpack.c.b16 %v1444, %v1440
    %v1577 = vpack.c.b16 %v1445, %v1441
    %v1578 = vpack.c.b16 %v1446, %v1442
    %v1579 = vpack.c.b16 %v1451, %v1447
    %v1580 = vpack.c.b16 %v1452, %v1448
    %v1581 = vpack.c.b16 %v1453, %v1449
    %v1582 = vpack.c.b16 %v1454, %v1450
    %1711 = vmatprep.subr.bf16.mxu0 %v1456
    %1712 = vmatpush1.bf16.msra.mxu0 %v1455
    %1713 = vmatprep.subr.bf16.mxu0 %v1460
    %1714 = vmatpush1.bf16.msra.mxu0 %v1459
    %1715 = vmatprep.subr.bf16.mxu0 %v1464
    %1716 = vmatpush1.bf16.msra.mxu0 %v1463
    %1717 = vmatprep.subr.bf16.mxu0 %v1468
    %1718 = vmatpush1.bf16.msra.mxu0 %v1467
    %1719 = vmatprep.subr.bf16.mxu0 %v1472
    %1720 = vmatpush1.bf16.msra.mxu0 %v1471
    %1721 = vmatprep.subr.bf16.mxu0 %v1476
    %1722 = vmatpush1.bf16.msra.mxu0 %v1475
    %1723 = vmatprep.subr.bf16.mxu0 %v1480
    %1724 = vmatpush1.bf16.msra.mxu0 %v1479
    %1725 = vmatprep.subr.bf16.mxu0 %v1484
    %1726 = vmatpush1.bf16.msra.mxu0 %v1483
    %1727 = vmatprep.subr.bf16.mxu0 %v1488
    %1728 = vmatpush1.bf16.msra.mxu0 %v1487
    %1729 = vmatprep.subr.bf16.mxu0 %v1492
    %1730 = vmatpush1.bf16.msra.mxu0 %v1491
    %1731 = vmatprep.subr.bf16.mxu0 %v1496
    %1732 = vmatpush1.bf16.msra.mxu0 %v1495
    %1733 = vmatprep.subr.bf16.mxu0 %v1500
    %1734 = vmatpush1.bf16.msra.mxu0 %v1499
    %1735 = vmatprep.subr.bf16.mxu0 %v1504
    %1736 = vmatpush1.bf16.msra.mxu0 %v1503
    %1737 = vmatprep.subr.bf16.mxu0 %v1508
    %1738 = vmatpush1.bf16.msra.mxu0 %v1507
    %1739 = vmatprep.subr.bf16.mxu0 %v1512
    %1740 = vmatpush1.bf16.msra.mxu0 %v1511
    %1741 = vmatprep.subr.bf16.mxu0 %v1516
    %1742 = vmatpush1.bf16.msra.mxu0 %v1515
    %1743 = vmatprep.mubr.bf16.mxu0 %v918
    %1744 = vmatmul.mubr.bf16.gmra.mrb[0].mxu0 %v917
    %v1745 = vpop.f32.mrb[0].mxu0
    %v1746 = vadd.f32 %v1054, %v1745
    %v1747 = vpop.f32.mrb[0].mxu0
    %v1748 = vadd.f32 %v1058, %v1747
    %v1749 = vpop.f32.mrb[0].mxu0
    %v1750 = vpop.f32.mrb[0].mxu0
    %1751 = vdwg.mxu0
    %1752 = vmatprep.subr.bf16.mxu0 %v1520
    %1753 = vmatpush1.bf16.msra.mxu0 %v1519
    %1754 = vmatprep.subr.bf16.mxu0 %v1524
    %1755 = vmatpush1.bf16.msra.mxu0 %v1523
    %1756 = vmatprep.subr.bf16.mxu0 %v1528
    %1757 = vmatpush1.bf16.msra.mxu0 %v1527
    %1758 = vmatprep.subr.bf16.mxu0 %v1532
    %1759 = vmatpush1.bf16.msra.mxu0 %v1531
    %1760 = vmatprep.subr.bf16.mxu0 %v1536
    %1761 = vmatpush1.bf16.msra.mxu0 %v1535
    %1762 = vmatprep.subr.bf16.mxu0 %v1540
    %1763 = vmatpush1.bf16.msra.mxu0 %v1539
    %1764 = vmatprep.subr.bf16.mxu0 %v1544
    %1765 = vmatpush1.bf16.msra.mxu0 %v1543
    %1766 = vmatprep.subr.bf16.mxu0 %v1548
    %1767 = vmatpush1.bf16.msra.mxu0 %v1547
    %1768 = vmatprep.subr.bf16.mxu0 %v1552
    %1769 = vmatpush1.bf16.msra.mxu0 %v1551
    %1770 = vmatprep.subr.bf16.mxu0 %v1556
    %1771 = vmatpush1.bf16.msra.mxu0 %v1555
    %1772 = vmatprep.subr.bf16.mxu0 %v1560
    %1773 = vmatpush1.bf16.msra.mxu0 %v1559
    %1774 = vmatprep.subr.bf16.mxu0 %v1564
    %1775 = vmatpush1.bf16.msra.mxu0 %v1563
    %1776 = vmatprep.subr.bf16.mxu0 %v1568
    %1777 = vmatpush1.bf16.msra.mxu0 %v1567
    %1778 = vmatprep.subr.bf16.mxu0 %v1572
    %1779 = vmatpush1.bf16.msra.mxu0 %v1571
    %1780 = vmatprep.subr.bf16.mxu0 %v1576
    %1781 = vmatpush1.bf16.msra.mxu0 %v1575
    %1782 = vmatprep.subr.bf16.mxu0 %v1580
    %1783 = vmatpush1.bf16.msra.mxu0 %v1579
    %1784 = vmatprep.mubr.bf16.mxu0 %v920
    %1785 = vmatmul.mubr.bf16.gmra.mrb[0].mxu0 %v919
    %v1786 = vpop.f32.mrb[0].mxu0
    %v1787 = vadd.f32 %v1746, %v1786
    %v1788 = vpop.f32.mrb[0].mxu0
    %v1789 = vadd.f32 %v1748, %v1788
    %v1790 = vpop.f32.mrb[0].mxu0
    %v1791 = vpop.f32.mrb[0].mxu0
    %1792 = vdwg.mxu0
    %1793 = vmatprep.subr.bf16.mxu0 %v1458
    %1794 = vmatpush1.bf16.msra.mxu0 %v1457
    %1795 = vmatprep.subr.bf16.mxu0 %v1462
    %1796 = vmatpush1.bf16.msra.mxu0 %v1461
    %1797 = vmatprep.subr.bf16.mxu0 %v1466
    %1798 = vmatpush1.bf16.msra.mxu0 %v1465
    %1799 = vmatprep.subr.bf16.mxu0 %v1470
    %1800 = vmatpush1.bf16.msra.mxu0 %v1469
    %1801 = vmatprep.subr.bf16.mxu0 %v1474
    %1802 = vmatpush1.bf16.msra.mxu0 %v1473
    %1803 = vmatprep.subr.bf16.mxu0 %v1478
    %1804 = vmatpush1.bf16.msra.mxu0 %v1477
    %1805 = vmatprep.subr.bf16.mxu0 %v1482
    %1806 = vmatpush1.bf16.msra.mxu0 %v1481
    %1807 = vmatprep.subr.bf16.mxu0 %v1486
    %1808 = vmatpush1.bf16.msra.mxu0 %v1485
    %1809 = vmatprep.subr.bf16.mxu0 %v1490
    %1810 = vmatpush1.bf16.msra.mxu0 %v1489
    %1811 = vmatprep.subr.bf16.mxu0 %v1494
    %1812 = vmatpush1.bf16.msra.mxu0 %v1493
    %1813 = vmatprep.subr.bf16.mxu0 %v1498
    %1814 = vmatpush1.bf16.msra.mxu0 %v1497
    %1815 = vmatprep.subr.bf16.mxu0 %v1502
    %1816 = vmatpush1.bf16.msra.mxu0 %v1501
    %1817 = vmatprep.subr.bf16.mxu0 %v1506
    %1818 = vmatpush1.bf16.msra.mxu0 %v1505
    %1819 = vmatprep.subr.bf16.mxu0 %v1510
    %1820 = vmatpush1.bf16.msra.mxu0 %v1509
    %1821 = vmatprep.subr.bf16.mxu0 %v1514
    %1822 = vmatpush1.bf16.msra.mxu0 %v1513
    %1823 = vmatprep.subr.bf16.mxu0 %v1518
    %1824 = vmatpush1.bf16.msra.mxu0 %v1517
    %1825 = vmatprep.mubr.bf16.mxu0 %v918
    %1826 = vmatmul.mubr.bf16.gmra.mrb[0].mxu0 %v917
    %v1827 = vpop.f32.mrb[0].mxu0
    %v1828 = vadd.f32 %v1062, %v1827
    %v1829 = vpop.f32.mrb[0].mxu0
    %v1830 = vadd.f32 %v1066, %v1829
    %v1831 = vpop.f32.mrb[0].mxu0
    %v1832 = vpop.f32.mrb[0].mxu0
    %1833 = vdwg.mxu0
    %1834 = vmatprep.subr.bf16.mxu0 %v1522
    %1835 = vmatpush1.bf16.msra.mxu0 %v1521
    %1836 = vmatprep.subr.bf16.mxu0 %v1526
    %1837 = vmatpush1.bf16.msra.mxu0 %v1525
    %1838 = vmatprep.subr.bf16.mxu0 %v1530
    %1839 = vmatpush1.bf16.msra.mxu0 %v1529
    %1840 = vmatprep.subr.bf16.mxu0 %v1534
    %1841 = vmatpush1.bf16.msra.mxu0 %v1533
    %1842 = vmatprep.subr.bf16.mxu0 %v1538
    %1843 = vmatpush1.bf16.msra.mxu0 %v1537
    %1844 = vmatprep.subr.bf16.mxu0 %v1542
    %1845 = vmatpush1.bf16.msra.mxu0 %v1541
    %1846 = vmatprep.subr.bf16.mxu0 %v1546
    %1847 = vmatpush1.bf16.msra.mxu0 %v1545
    %1848 = vmatprep.subr.bf16.mxu0 %v1550
    %1849 = vmatpush1.bf16.msra.mxu0 %v1549
    %1850 = vmatprep.subr.bf16.mxu0 %v1554
    %1851 = vmatpush1.bf16.msra.mxu0 %v1553
    %1852 = vmatprep.subr.bf16.mxu0 %v1558
    %1853 = vmatpush1.bf16.msra.mxu0 %v1557
    %1854 = vmatprep.subr.bf16.mxu0 %v1562
    %1855 = vmatpush1.bf16.msra.mxu0 %v1561
    %1856 = vmatprep.subr.bf16.mxu0 %v1566
    %1857 = vmatpush1.bf16.msra.mxu0 %v1565
    %1858 = vmatprep.subr.bf16.mxu0 %v1570
    %1859 = vmatpush1.bf16.msra.mxu0 %v1569
    %1860 = vmatprep.subr.bf16.mxu0 %v1574
    %1861 = vmatpush1.bf16.msra.mxu0 %v1573
    %1862 = vmatprep.subr.bf16.mxu0 %v1578
    %1863 = vmatpush1.bf16.msra.mxu0 %v1577
    %1864 = vmatprep.subr.bf16.mxu0 %v1582
    %1865 = vmatpush1.bf16.msra.mxu0 %v1581
    %1866 = vmatprep.mubr.bf16.mxu0 %v920
    %1867 = vmatmul.mubr.bf16.gmra.mrb[0].mxu0 %v919
    %v1868 = vpop.f32.mrb[0].mxu0
    %v1869 = vadd.f32 %v1828, %v1868
    %v1870 = vpop.f32.mrb[0].mxu0
    %v1871 = vadd.f32 %v1830, %v1870
    %v1872 = vpop.f32.mrb[0].mxu0
    %v1873 = vpop.f32.mrb[0].mxu0
    %1874 = vdwg.mxu0
    %v1875 = vmax.f32 %v1787, 0.0
    %v1876 = vmax.f32 %v1789, 0.0
    %v1877 = vmax.f32 %v1869, 0.0
    %v1878 = vmax.f32 %v1871, 0.0
    %v1879 = vpack.c.bf16 %v1875, %v1875
    %v1880 = vpack.c.bf16 %v1876, %v1876
    %v1881 = vpack.c.bf16 %v1877, %v1877
    %v1882 = vpack.c.bf16 %v1878, %v1878
    %1883 = vmatprep.subr.bf16.mxu0 %v1456
    %1884 = vmatpush1.bf16.msra.mxu0 %v1455
    %1885 = vmatprep.subr.bf16.mxu0 %v1460
    %1886 = vmatpush1.bf16.msra.mxu0 %v1459
    %1887 = vmatprep.subr.bf16.mxu0 %v1464
    %1888 = vmatpush1.bf16.msra.mxu0 %v1463
    %1889 = vmatprep.subr.bf16.mxu0 %v1468
    %1890 = vmatpush1.bf16.msra.mxu0 %v1467
    %1891 = vmatprep.subr.bf16.mxu0 %v1472
    %1892 = vmatpush1.bf16.msra.mxu0 %v1471
    %1893 = vmatprep.subr.bf16.mxu0 %v1476
    %1894 = vmatpush1.bf16.msra.mxu0 %v1475
    %1895 = vmatprep.subr.bf16.mxu0 %v1480
    %1896 = vmatpush1.bf16.msra.mxu0 %v1479
    %1897 = vmatprep.subr.bf16.mxu0 %v1484
    %1898 = vmatpush1.bf16.msra.mxu0 %v1483
    %1899 = vmatprep.subr.bf16.mxu0 %v1488
    %1900 = vmatpush1.bf16.msra.mxu0 %v1487
    %1901 = vmatprep.subr.bf16.mxu0 %v1492
    %1902 = vmatpush1.bf16.msra.mxu0 %v1491
    %1903 = vmatprep.subr.bf16.mxu0 %v1496
    %1904 = vmatpush1.bf16.msra.mxu0 %v1495
    %1905 = vmatprep.subr.bf16.mxu0 %v1500
    %1906 = vmatpush1.bf16.msra.mxu0 %v1499
    %1907 = vmatprep.subr.bf16.mxu0 %v1504
    %1908 = vmatpush1.bf16.msra.mxu0 %v1503
    %1909 = vmatprep.subr.bf16.mxu0 %v1508
    %1910 = vmatpush1.bf16.msra.mxu0 %v1507
    %1911 = vmatprep.subr.bf16.mxu0 %v1512
    %1912 = vmatpush1.bf16.msra.mxu0 %v1511
    %1913 = vmatprep.subr.bf16.mxu0 %v1516
    %1914 = vmatpush1.bf16.msra.mxu0 %v1515
    %1915 = vmatprep.mubr.bf16.mxu0 %v1880
    %1916 = vmatmul.mubr.bf16.gmra.mrb[0].mxu0 %v1879
    %v1917 = vpop.f32.mrb[0].mxu0
    %v1918 = vadd.f32 %v1054, %v1917
    %v1919 = vpop.f32.mrb[0].mxu0
    %v1920 = vadd.f32 %v1058, %v1919
    %v1921 = vpop.f32.mrb[0].mxu0
    %v1922 = vpop.f32.mrb[0].mxu0
    %1923 = vdwg.mxu0
    %1924 = vmatprep.subr.bf16.mxu0 %v1520
    %1925 = vmatpush1.bf16.msra.mxu0 %v1519
    %1926 = vmatprep.subr.bf16.mxu0 %v1524
    %1927 = vmatpush1.bf16.msra.mxu0 %v1523
    %1928 = vmatprep.subr.bf16.mxu0 %v1528
    %1929 = vmatpush1.bf16.msra.mxu0 %v1527
    %1930 = vmatprep.subr.bf16.mxu0 %v1532
    %1931 = vmatpush1.bf16.msra.mxu0 %v1531
    %1932 = vmatprep.subr.bf16.mxu0 %v1536
    %1933 = vmatpush1.bf16.msra.mxu0 %v1535
    %1934 = vmatprep.subr.bf16.mxu0 %v1540
    %1935 = vmatpush1.bf16.msra.mxu0 %v1539
    %1936 = vmatprep.subr.bf16.mxu0 %v1544
    %1937 = vmatpush1.bf16.msra.mxu0 %v1543
    %1938 = vmatprep.subr.bf16.mxu0 %v1548
    %1939 = vmatpush1.bf16.msra.mxu0 %v1547
    %1940 = vmatprep.subr.bf16.mxu0 %v1552
    %1941 = vmatpush1.bf16.msra.mxu0 %v1551
    %1942 = vmatprep.subr.bf16.mxu0 %v1556
    %1943 = vmatpush1.bf16.msra.mxu0 %v1555
    %1944 = vmatprep.subr.bf16.mxu0 %v1560
    %1945 = vmatpush1.bf16.msra.mxu0 %v1559
    %1946 = vmatprep.subr.bf16.mxu0 %v1564
    %1947 = vmatpush1.bf16.msra.mxu0 %v1563
    %1948 = vmatprep.subr.bf16.mxu0 %v1568
    %1949 = vmatpush1.bf16.msra.mxu0 %v1567
    %1950 = vmatprep.subr.bf16.mxu0 %v1572
    %1951 = vmatpush1.bf16.msra.mxu0 %v1571
    %1952 = vmatprep.subr.bf16.mxu0 %v1576
    %1953 = vmatpush1.bf16.msra.mxu0 %v1575
    %1954 = vmatprep.subr.bf16.mxu0 %v1580
    %1955 = vmatpush1.bf16.msra.mxu0 %v1579
    %1956 = vmatprep.mubr.bf16.mxu0 %v1882
    %1957 = vmatmul.mubr.bf16.gmra.mrb[0].mxu0 %v1881
    %v1958 = vpop.f32.mrb[0].mxu0
    %v1959 = vadd.f32 %v1918, %v1958
    %v1960 = vpop.f32.mrb[0].mxu0
    %v1961 = vadd.f32 %v1920, %v1960
    %v1962 = vpop.f32.mrb[0].mxu0
    %v1963 = vpop.f32.mrb[0].mxu0
    %1964 = vdwg.mxu0
    %1965 = vmatprep.subr.bf16.mxu0 %v1458
    %1966 = vmatpush1.bf16.msra.mxu0 %v1457
    %1967 = vmatprep.subr.bf16.mxu0 %v1462
    %1968 = vmatpush1.bf16.msra.mxu0 %v1461
    %1969 = vmatprep.subr.bf16.mxu0 %v1466
    %1970 = vmatpush1.bf16.msra.mxu0 %v1465
    %1971 = vmatprep.subr.bf16.mxu0 %v1470
    %1972 = vmatpush1.bf16.msra.mxu0 %v1469
    %1973 = vmatprep.subr.bf16.mxu0 %v1474
    %1974 = vmatpush1.bf16.msra.mxu0 %v1473
    %1975 = vmatprep.subr.bf16.mxu0 %v1478
    %1976 = vmatpush1.bf16.msra.mxu0 %v1477
    %1977 = vmatprep.subr.bf16.mxu0 %v1482
    %1978 = vmatpush1.bf16.msra.mxu0 %v1481
    %1979 = vmatprep.subr.bf16.mxu0 %v1486
    %1980 = vmatpush1.bf16.msra.mxu0 %v1485
    %1981 = vmatprep.subr.bf16.mxu0 %v1490
    %1982 = vmatpush1.bf16.msra.mxu0 %v1489
    %1983 = vmatprep.subr.bf16.mxu0 %v1494
    %1984 = vmatpush1.bf16.msra.mxu0 %v1493
    %1985 = vmatprep.subr.bf16.mxu0 %v1498
    %1986 = vmatpush1.bf16.msra.mxu0 %v1497
    %1987 = vmatprep.subr.bf16.mxu0 %v1502
    %1988 = vmatpush1.bf16.msra.mxu0 %v1501
    %1989 = vmatprep.subr.bf16.mxu0 %v1506
    %1990 = vmatpush1.bf16.msra.mxu0 %v1505
    %1991 = vmatprep.subr.bf16.mxu0 %v1510
    %1992 = vmatpush1.bf16.msra.mxu0 %v1509
    %1993 = vmatprep.subr.bf16.mxu0 %v1514
    %1994 = vmatpush1.bf16.msra.mxu0 %v1513
    %1995 = vmatprep.subr.bf16.mxu0 %v1518
    %1996 = vmatpush1.bf16.msra.mxu0 %v1517
    %1997 = vmatprep.mubr.bf16.mxu0 %v1880
    %1998 = vmatmul.mubr.bf16.gmra.mrb[0].mxu0 %v1879
    %v1999 = vpop.f32.mrb[0].mxu0
    %v2000 = vadd.f32 %v1062, %v1999
    %v2001 = vpop.f32.mrb[0].mxu0
    %v2002 = vadd.f32 %v1066, %v2001
    %v2003 = vpop.f32.mrb[0].mxu0
    %v2004 = vpop.f32.mrb[0].mxu0
    %2005 = vdwg.mxu0
    %2006 = vmatprep.subr.bf16.mxu0 %v1522
    %2007 = vmatpush1.bf16.msra.mxu0 %v1521
    %2008 = vmatprep.subr.bf16.mxu0 %v1526
    %2009 = vmatpush1.bf16.msra.mxu0 %v1525
    %2010 = vmatprep.subr.bf16.mxu0 %v1530
    %2011 = vmatpush1.bf16.msra.mxu0 %v1529
    %2012 = vmatprep.subr.bf16.mxu0 %v1534
    %2013 = vmatpush1.bf16.msra.mxu0 %v1533
    %2014 = vmatprep.subr.bf16.mxu0 %v1538
    %2015 = vmatpush1.bf16.msra.mxu0 %v1537
    %2016 = vmatprep.subr.bf16.mxu0 %v1542
    %2017 = vmatpush1.bf16.msra.mxu0 %v1541
    %2018 = vmatprep.subr.bf16.mxu0 %v1546
    %2019 = vmatpush1.bf16.msra.mxu0 %v1545
    %2020 = vmatprep.subr.bf16.mxu0 %v1550
    %2021 = vmatpush1.bf16.msra.mxu0 %v1549
    %2022 = vmatprep.subr.bf16.mxu0 %v1554
    %2023 = vmatpush1.bf16.msra.mxu0 %v1553
    %2024 = vmatprep.subr.bf16.mxu0 %v1558
    %2025 = vmatpush1.bf16.msra.mxu0 %v1557
    %2026 = vmatprep.subr.bf16.mxu0 %v1562
    %2027 = vmatpush1.bf16.msra.mxu0 %v1561
    %2028 = vmatprep.subr.bf16.mxu0 %v1566
    %2029 = vmatpush1.bf16.msra.mxu0 %v1565
    %2030 = vmatprep.subr.bf16.mxu0 %v1570
    %2031 = vmatpush1.bf16.msra.mxu0 %v1569
    %2032 = vmatprep.subr.bf16.mxu0 %v1574
    %2033 = vmatpush1.bf16.msra.mxu0 %v1573
    %2034 = vmatprep.subr.bf16.mxu0 %v1578
    %2035 = vmatpush1.bf16.msra.mxu0 %v1577
    %2036 = vmatprep.subr.bf16.mxu0 %v1582
    %2037 = vmatpush1.bf16.msra.mxu0 %v1581
    %2038 = vmatprep.mubr.bf16.mxu0 %v1882
    %2039 = vmatmul.mubr.bf16.gmra.mrb[0].mxu0 %v1881
    %v2040 = vpop.f32.mrb[0].mxu0
    %v2041 = vadd.f32 %v2000, %v2040
    %v2042 = vpop.f32.mrb[0].mxu0
    %v2043 = vadd.f32 %v2002, %v2042
    %v2044 = vpop.f32.mrb[0].mxu0
    %v2045 = vpop.f32.mrb[0].mxu0
    %2046 = vdwg.mxu0
    %v2047 = vmax.f32 %v1959, 0.0
    %v2048 = vmax.f32 %v1961, 0.0
    %v2049 = vmax.f32 %v2041, 0.0
    %v2050 = vmax.f32 %v2043, 0.0
    %v2051 = vpack.c.bf16 %v2047, %v2047
    %v2052 = vpack.c.bf16 %v2048, %v2048
    %v2053 = vpack.c.bf16 %v2049, %v2049
    %v2054 = vpack.c.bf16 %v2050, %v2050
    %2055 = vmatprep.subr.bf16.mxu0 %v1456
    %2056 = vmatpush1.bf16.msra.mxu0 %v1455
    %2057 = vmatprep.subr.bf16.mxu0 %v1460
    %2058 = vmatpush1.bf16.msra.mxu0 %v1459
    %2059 = vmatprep.subr.bf16.mxu0 %v1464
    %2060 = vmatpush1.bf16.msra.mxu0 %v1463
    %2061 = vmatprep.subr.bf16.mxu0 %v1468
    %2062 = vmatpush1.bf16.msra.mxu0 %v1467
    %2063 = vmatprep.subr.bf16.mxu0 %v1472
    %2064 = vmatpush1.bf16.msra.mxu0 %v1471
    %2065 = vmatprep.subr.bf16.mxu0 %v1476
    %2066 = vmatpush1.bf16.msra.mxu0 %v1475
    %2067 = vmatprep.subr.bf16.mxu0 %v1480
    %2068 = vmatpush1.bf16.msra.mxu0 %v1479
    %2069 = vmatprep.subr.bf16.mxu0 %v1484
    %2070 = vmatpush1.bf16.msra.mxu0 %v1483
    %2071 = vmatprep.subr.bf16.mxu0 %v1488
    %2072 = vmatpush1.bf16.msra.mxu0 %v1487
    %2073 = vmatprep.subr.bf16.mxu0 %v1492
    %2074 = vmatpush1.bf16.msra.mxu0 %v1491
    %2075 = vmatprep.subr.bf16.mxu0 %v1496
    %2076 = vmatpush1.bf16.msra.mxu0 %v1495
    %2077 = vmatprep.subr.bf16.mxu0 %v1500
    %2078 = vmatpush1.bf16.msra.mxu0 %v1499
    %2079 = vmatprep.subr.bf16.mxu0 %v1504
    %2080 = vmatpush1.bf16.msra.mxu0 %v1503
    %2081 = vmatprep.subr.bf16.mxu0 %v1508
    %2082 = vmatpush1.bf16.msra.mxu0 %v1507
    %2083 = vmatprep.subr.bf16.mxu0 %v1512
    %2084 = vmatpush1.bf16.msra.mxu0 %v1511
    %2085 = vmatprep.subr.bf16.mxu0 %v1516
    %2086 = vmatpush1.bf16.msra.mxu0 %v1515
    %2087 = vmatprep.mubr.bf16.mxu0 %v2052
    %2088 = vmatmul.mubr.bf16.gmra.mrb[0].mxu0 %v2051
    %v2089 = vpop.f32.mrb[0].mxu0
    %v2090 = vadd.f32 %v1054, %v2089
    %v2091 = vpop.f32.mrb[0].mxu0
    %v2092 = vadd.f32 %v1058, %v2091
    %v2093 = vpop.f32.mrb[0].mxu0
    %v2094 = vpop.f32.mrb[0].mxu0
    %2095 = vdwg.mxu0
    %2096 = vmatprep.subr.bf16.mxu0 %v1520
    %2097 = vmatpush1.bf16.msra.mxu0 %v1519
    %2098 = vmatprep.subr.bf16.mxu0 %v1524
    %2099 = vmatpush1.bf16.msra.mxu0 %v1523
    %2100 = vmatprep.subr.bf16.mxu0 %v1528
    %2101 = vmatpush1.bf16.msra.mxu0 %v1527
    %2102 = vmatprep.subr.bf16.mxu0 %v1532
    %2103 = vmatpush1.bf16.msra.mxu0 %v1531
    %2104 = vmatprep.subr.bf16.mxu0 %v1536
    %2105 = vmatpush1.bf16.msra.mxu0 %v1535
    %2106 = vmatprep.subr.bf16.mxu0 %v1540
    %2107 = vmatpush1.bf16.msra.mxu0 %v1539
    %2108 = vmatprep.subr.bf16.mxu0 %v1544
    %2109 = vmatpush1.bf16.msra.mxu0 %v1543
    %2110 = vmatprep.subr.bf16.mxu0 %v1548
    %2111 = vmatpush1.bf16.msra.mxu0 %v1547
    %2112 = vmatprep.subr.bf16.mxu0 %v1552
    %2113 = vmatpush1.bf16.msra.mxu0 %v1551
    %2114 = vmatprep.subr.bf16.mxu0 %v1556
    %2115 = vmatpush1.bf16.msra.mxu0 %v1555
    %2116 = vmatprep.subr.bf16.mxu0 %v1560
    %2117 = vmatpush1.bf16.msra.mxu0 %v1559
    %2118 = vmatprep.subr.bf16.mxu0 %v1564
    %2119 = vmatpush1.bf16.msra.mxu0 %v1563
    %2120 = vmatprep.subr.bf16.mxu0 %v1568
    %2121 = vmatpush1.bf16.msra.mxu0 %v1567
    %2122 = vmatprep.subr.bf16.mxu0 %v1572
    %2123 = vmatpush1.bf16.msra.mxu0 %v1571
    %2124 = vmatprep.subr.bf16.mxu0 %v1576
    %2125 = vmatpush1.bf16.msra.mxu0 %v1575
    %2126 = vmatprep.subr.bf16.mxu0 %v1580
    %2127 = vmatpush1.bf16.msra.mxu0 %v1579
    %2128 = vmatprep.mubr.bf16.mxu0 %v2054
    %2129 = vmatmul.mubr.bf16.gmra.mrb[0].mxu0 %v2053
    %v2130 = vpop.f32.mrb[0].mxu0
    %v2131 = vadd.f32 %v2090, %v2130
    %v2132 = vpop.f32.mrb[0].mxu0
    %v2133 = vadd.f32 %v2092, %v2132
    %v2134 = vpop.f32.mrb[0].mxu0
    %v2135 = vpop.f32.mrb[0].mxu0
    %2136 = vdwg.mxu0
    %2137 = vmatprep.subr.bf16.mxu0 %v1458
    %2138 = vmatpush1.bf16.msra.mxu0 %v1457
    %2139 = vmatprep.subr.bf16.mxu0 %v1462
    %2140 = vmatpush1.bf16.msra.mxu0 %v1461
    %2141 = vmatprep.subr.bf16.mxu0 %v1466
    %2142 = vmatpush1.bf16.msra.mxu0 %v1465
    %2143 = vmatprep.subr.bf16.mxu0 %v1470
    %2144 = vmatpush1.bf16.msra.mxu0 %v1469
    %2145 = vmatprep.subr.bf16.mxu0 %v1474
    %2146 = vmatpush1.bf16.msra.mxu0 %v1473
    %2147 = vmatprep.subr.bf16.mxu0 %v1478
    %2148 = vmatpush1.bf16.msra.mxu0 %v1477
    %2149 = vmatprep.subr.bf16.mxu0 %v1482
    %2150 = vmatpush1.bf16.msra.mxu0 %v1481
    %2151 = vmatprep.subr.bf16.mxu0 %v1486
    %2152 = vmatpush1.bf16.msra.mxu0 %v1485
    %2153 = vmatprep.subr.bf16.mxu0 %v1490
    %2154 = vmatpush1.bf16.msra.mxu0 %v1489
    %2155 = vmatprep.subr.bf16.mxu0 %v1494
    %2156 = vmatpush1.bf16.msra.mxu0 %v1493
    %2157 = vmatprep.subr.bf16.mxu0 %v1498
    %2158 = vmatpush1.bf16.msra.mxu0 %v1497
    %2159 = vmatprep.subr.bf16.mxu0 %v1502
    %2160 = vmatpush1.bf16.msra.mxu0 %v1501
    %2161 = vmatprep.subr.bf16.mxu0 %v1506
    %2162 = vmatpush1.bf16.msra.mxu0 %v1505
    %2163 = vmatprep.subr.bf16.mxu0 %v1510
    %2164 = vmatpush1.bf16.msra.mxu0 %v1509
    %2165 = vmatprep.subr.bf16.mxu0 %v1514
    %2166 = vmatpush1.bf16.msra.mxu0 %v1513
    %2167 = vmatprep.subr.bf16.mxu0 %v1518
    %2168 = vmatpush1.bf16.msra.mxu0 %v1517
    %2169 = vmatprep.mubr.bf16.mxu0 %v2052
    %2170 = vmatmul.mubr.bf16.gmra.mrb[0].mxu0 %v2051
    %v2171 = vpop.f32.mrb[0].mxu0
    %v2172 = vadd.f32 %v1062, %v2171
    %v2173 = vpop.f32.mrb[0].mxu0
    %v2174 = vadd.f32 %v1066, %v2173
    %v2175 = vpop.f32.mrb[0].mxu0
    %v2176 = vpop.f32.mrb[0].mxu0
    %2177 = vdwg.mxu0
    %2178 = vmatprep.subr.bf16.mxu0 %v1522
    %2179 = vmatpush1.bf16.msra.mxu0 %v1521
    %2180 = vmatprep.subr.bf16.mxu0 %v1526
    %2181 = vmatpush1.bf16.msra.mxu0 %v1525
    %2182 = vmatprep.subr.bf16.mxu0 %v1530
    %2183 = vmatpush1.bf16.msra.mxu0 %v1529
    %2184 = vmatprep.subr.bf16.mxu0 %v1534
    %2185 = vmatpush1.bf16.msra.mxu0 %v1533
    %2186 = vmatprep.subr.bf16.mxu0 %v1538
    %2187 = vmatpush1.bf16.msra.mxu0 %v1537
    %2188 = vmatprep.subr.bf16.mxu0 %v1542
    %2189 = vmatpush1.bf16.msra.mxu0 %v1541
    %2190 = vmatprep.subr.bf16.mxu0 %v1546
    %2191 = vmatpush1.bf16.msra.mxu0 %v1545
    %2192 = vmatprep.subr.bf16.mxu0 %v1550
    %2193 = vmatpush1.bf16.msra.mxu0 %v1549
    %2194 = vmatprep.subr.bf16.mxu0 %v1554
    %2195 = vmatpush1.bf16.msra.mxu0 %v1553
    %2196 = vmatprep.subr.bf16.mxu0 %v1558
    %2197 = vmatpush1.bf16.msra.mxu0 %v1557
    %2198 = vmatprep.subr.bf16.mxu0 %v1562
    %2199 = vmatpush1.bf16.msra.mxu0 %v1561
    %2200 = vmatprep.subr.bf16.mxu0 %v1566
    %2201 = vmatpush1.bf16.msra.mxu0 %v1565
    %2202 = vmatprep.subr.bf16.mxu0 %v1570
    %2203 = vmatpush1.bf16.msra.mxu0 %v1569
    %2204 = vmatprep.subr.bf16.mxu0 %v1574
    %2205 = vmatpush1.bf16.msra.mxu0 %v1573
    %2206 = vmatprep.subr.bf16.mxu0 %v1578
    %2207 = vmatpush1.bf16.msra.mxu0 %v1577
    %2208 = vmatprep.subr.bf16.mxu0 %v1582
    %2209 = vmatpush1.bf16.msra.mxu0 %v1581
    %2210 = vmatprep.mubr.bf16.mxu0 %v2054
    %2211 = vmatmul.mubr.bf16.gmra.mrb[0].mxu0 %v2053
    %v2212 = vpop.f32.mrb[0].mxu0
    %v2213 = vadd.f32 %v2172, %v2212
    %v2214 = vpop.f32.mrb[0].mxu0
    %v2215 = vadd.f32 %v2174, %v2214
    %v2216 = vpop.f32.mrb[0].mxu0
    %v2217 = vpop.f32.mrb[0].mxu0
    %2218 = vdwg.mxu0
    %v2219 = vmax.f32 %v2131, 0.0
    %v2220 = vmax.f32 %v2133, 0.0
    %v2221 = vmax.f32 %v2213, 0.0
    %v2222 = vmax.f32 %v2215, 0.0
    %v2223 = vpack.c.bf16 %v2219, %v2219
    %v2224 = vpack.c.bf16 %v2220, %v2220
    %v2225 = vpack.c.bf16 %v2221, %v2221
    %v2226 = vpack.c.bf16 %v2222, %v2222
    %v2227 = vld [vmem:[#allocation8] sm:$0xff]
    %v2228 = vld [vmem:[#allocation8 + $0x8] sm:$0xff]
    %v2229 = vld [vmem:[#allocation8 + $0x10] sm:$0xff]
    %v2230 = vld [vmem:[#allocation8 + $0x18] sm:$0xff]
    %v2231 = vld [vmem:[#allocation8 + $0x20] sm:$0xff]
    %v2232 = vld [vmem:[#allocation8 + $0x28] sm:$0xff]
    %v2233 = vld [vmem:[#allocation8 + $0x30] sm:$0xff]
    %v2234 = vld [vmem:[#allocation8 + $0x38] sm:$0xff]
    %v2235 = vld [vmem:[#allocation8 + $0x40] sm:$0xff]
    %v2236 = vld [vmem:[#allocation8 + $0x48] sm:$0xff]
    %v2237 = vld [vmem:[#allocation8 + $0x50] sm:$0xff]
    %v2238 = vld [vmem:[#allocation8 + $0x58] sm:$0xff]
    %v2239 = vld [vmem:[#allocation8 + $0x60] sm:$0xff]
    %v2240 = vld [vmem:[#allocation8 + $0x68] sm:$0xff]
    %v2241 = vld [vmem:[#allocation8 + $0x70] sm:$0xff]
    %v2242 = vld [vmem:[#allocation8 + $0x78] sm:$0xff]
    %v2243 = vld [vmem:[#allocation8 + $0x80] sm:$0xff]
    %v2244 = vld [vmem:[#allocation8 + $0x88] sm:$0xff]
    %v2245 = vld [vmem:[#allocation8 + $0x90] sm:$0xff]
    %v2246 = vld [vmem:[#allocation8 + $0x98] sm:$0xff]
    %v2247 = vld [vmem:[#allocation8 + $0xa0] sm:$0xff]
    %v2248 = vld [vmem:[#allocation8 + $0xa8] sm:$0xff]
    %v2249 = vld [vmem:[#allocation8 + $0xb0] sm:$0xff]
    %v2250 = vld [vmem:[#allocation8 + $0xb8] sm:$0xff]
    %v2251 = vld [vmem:[#allocation8 + $0xc0] sm:$0xff]
    %v2252 = vld [vmem:[#allocation8 + $0xc8] sm:$0xff]
    %v2253 = vld [vmem:[#allocation8 + $0xd0] sm:$0xff]
    %v2254 = vld [vmem:[#allocation8 + $0xd8] sm:$0xff]
    %v2255 = vld [vmem:[#allocation8 + $0xe0] sm:$0xff]
    %v2256 = vld [vmem:[#allocation8 + $0xe8] sm:$0xff]
    %v2257 = vld [vmem:[#allocation8 + $0xf0] sm:$0xff]
    %v2258 = vld [vmem:[#allocation8 + $0xf8] sm:$0xff]
    %v2259 = vld [vmem:[#allocation8 + $0x100] sm:$0xff]
    %v2260 = vld [vmem:[#allocation8 + $0x108] sm:$0xff]
    %v2261 = vld [vmem:[#allocation8 + $0x110] sm:$0xff]
    %v2262 = vld [vmem:[#allocation8 + $0x118] sm:$0xff]
    %v2263 = vld [vmem:[#allocation8 + $0x120] sm:$0xff]
    %v2264 = vld [vmem:[#allocation8 + $0x128] sm:$0xff]
    %v2265 = vld [vmem:[#allocation8 + $0x130] sm:$0xff]
    %v2266 = vld [vmem:[#allocation8 + $0x138] sm:$0xff]
    %v2267 = vld [vmem:[#allocation8 + $0x140] sm:$0xff]
    %v2268 = vld [vmem:[#allocation8 + $0x148] sm:$0xff]
    %v2269 = vld [vmem:[#allocation8 + $0x150] sm:$0xff]
    %v2270 = vld [vmem:[#allocation8 + $0x158] sm:$0xff]
    %v2271 = vld [vmem:[#allocation8 + $0x160] sm:$0xff]
    %v2272 = vld [vmem:[#allocation8 + $0x168] sm:$0xff]
    %v2273 = vld [vmem:[#allocation8 + $0x170] sm:$0xff]
    %v2274 = vld [vmem:[#allocation8 + $0x178] sm:$0xff]
    %v2275 = vld [vmem:[#allocation8 + $0x180] sm:$0xff]
    %v2276 = vld [vmem:[#allocation8 + $0x188] sm:$0xff]
    %v2277 = vld [vmem:[#allocation8 + $0x190] sm:$0xff]
    %v2278 = vld [vmem:[#allocation8 + $0x198] sm:$0xff]
    %v2279 = vld [vmem:[#allocation8 + $0x1a0] sm:$0xff]
    %v2280 = vld [vmem:[#allocation8 + $0x1a8] sm:$0xff]
    %v2281 = vld [vmem:[#allocation8 + $0x1b0] sm:$0xff]
    %v2282 = vld [vmem:[#allocation8 + $0x1b8] sm:$0xff]
    %v2283 = vld [vmem:[#allocation8 + $0x1c0] sm:$0xff]
    %v2284 = vld [vmem:[#allocation8 + $0x1c8] sm:$0xff]
    %v2285 = vld [vmem:[#allocation8 + $0x1d0] sm:$0xff]
    %v2286 = vld [vmem:[#allocation8 + $0x1d8] sm:$0xff]
    %v2287 = vld [vmem:[#allocation8 + $0x1e0] sm:$0xff]
    %v2288 = vld [vmem:[#allocation8 + $0x1e8] sm:$0xff]
    %v2289 = vld [vmem:[#allocation8 + $0x1f0] sm:$0xff]
    %v2290 = vld [vmem:[#allocation8 + $0x1f8] sm:$0xff]
    %v2291 = vld [vmem:[%s10] sm:$0x3]
    %v2293 = vlaneseq
    %v2294 = vshrl.u32 %v2293, 7
    %v2295 = vsub.s32 0, %v2294
    %v2296 = vrot.slane %v2291, %v2295
    %v2297 = vlaneseq
    %v2298 = vshrl.u32 %v2297, 7
    %v2299 = vsub.s32 1, %v2298
    %v2300 = vrot.slane %v2291, %v2299
    %v2367 = vunpack.c.l.b16 %v2227
    %v2368 = vunpack.c.h.b16 %v2227
    %v2369 = vunpack.c.l.b16 %v2228
    %v2370 = vunpack.c.h.b16 %v2228
    %v2371 = vunpack.c.l.b16 %v2229
    %v2372 = vunpack.c.h.b16 %v2229
    %v2373 = vunpack.c.l.b16 %v2230
    %v2374 = vunpack.c.h.b16 %v2230
    %v2375 = vunpack.c.l.b16 %v2231
    %v2376 = vunpack.c.h.b16 %v2231
    %v2377 = vunpack.c.l.b16 %v2232
    %v2378 = vunpack.c.h.b16 %v2232
    %v2379 = vunpack.c.l.b16 %v2233
    %v2380 = vunpack.c.h.b16 %v2233
    %v2381 = vunpack.c.l.b16 %v2234
    %v2382 = vunpack.c.h.b16 %v2234
    %v2383 = vunpack.c.l.b16 %v2235
    %v2384 = vunpack.c.h.b16 %v2235
    %v2385 = vunpack.c.l.b16 %v2236
    %v2386 = vunpack.c.h.b16 %v2236
    %v2387 = vunpack.c.l.b16 %v2237
    %v2388 = vunpack.c.h.b16 %v2237
    %v2389 = vunpack.c.l.b16 %v2238
    %v2390 = vunpack.c.h.b16 %v2238
    %v2391 = vunpack.c.l.b16 %v2239
    %v2392 = vunpack.c.h.b16 %v2239
    %v2393 = vunpack.c.l.b16 %v2240
    %v2394 = vunpack.c.h.b16 %v2240
    %v2395 = vunpack.c.l.b16 %v2241
    %v2396 = vunpack.c.h.b16 %v2241
    %v2397 = vunpack.c.l.b16 %v2242
    %v2398 = vunpack.c.h.b16 %v2242
    %v2399 = vunpack.c.l.b16 %v2243
    %v2400 = vunpack.c.h.b16 %v2243
    %v2401 = vunpack.c.l.b16 %v2244
    %v2402 = vunpack.c.h.b16 %v2244
    %v2403 = vunpack.c.l.b16 %v2245
    %v2404 = vunpack.c.h.b16 %v2245
    %v2405 = vunpack.c.l.b16 %v2246
    %v2406 = vunpack.c.h.b16 %v2246
    %v2407 = vunpack.c.l.b16 %v2247
    %v2408 = vunpack.c.h.b16 %v2247
    %v2409 = vunpack.c.l.b16 %v2248
    %v2410 = vunpack.c.h.b16 %v2248
    %v2411 = vunpack.c.l.b16 %v2249
    %v2412 = vunpack.c.h.b16 %v2249
    %v2413 = vunpack.c.l.b16 %v2250
    %v2414 = vunpack.c.h.b16 %v2250
    %v2415 = vunpack.c.l.b16 %v2251
    %v2416 = vunpack.c.h.b16 %v2251
    %v2417 = vunpack.c.l.b16 %v2252
    %v2418 = vunpack.c.h.b16 %v2252
    %v2419 = vunpack.c.l.b16 %v2253
    %v2420 = vunpack.c.h.b16 %v2253
    %v2421 = vunpack.c.l.b16 %v2254
    %v2422 = vunpack.c.h.b16 %v2254
    %v2423 = vunpack.c.l.b16 %v2255
    %v2424 = vunpack.c.h.b16 %v2255
    %v2425 = vunpack.c.l.b16 %v2256
    %v2426 = vunpack.c.h.b16 %v2256
    %v2427 = vunpack.c.l.b16 %v2257
    %v2428 = vunpack.c.h.b16 %v2257
    %v2429 = vunpack.c.l.b16 %v2258
    %v2430 = vunpack.c.h.b16 %v2258
    %v2431 = vunpack.c.l.b16 %v2259
    %v2432 = vunpack.c.h.b16 %v2259
    %v2433 = vunpack.c.l.b16 %v2260
    %v2434 = vunpack.c.h.b16 %v2260
    %v2435 = vunpack.c.l.b16 %v2261
    %v2436 = vunpack.c.h.b16 %v2261
    %v2437 = vunpack.c.l.b16 %v2262
    %v2438 = vunpack.c.h.b16 %v2262
    %v2439 = vunpack.c.l.b16 %v2263
    %v2440 = vunpack.c.h.b16 %v2263
    %v2441 = vunpack.c.l.b16 %v2264
    %v2442 = vunpack.c.h.b16 %v2264
    %v2443 = vunpack.c.l.b16 %v2265
    %v2444 = vunpack.c.h.b16 %v2265
    %v2445 = vunpack.c.l.b16 %v2266
    %v2446 = vunpack.c.h.b16 %v2266
    %v2447 = vunpack.c.l.b16 %v2267
    %v2448 = vunpack.c.h.b16 %v2267
    %v2449 = vunpack.c.l.b16 %v2268
    %v2450 = vunpack.c.h.b16 %v2268
    %v2451 = vunpack.c.l.b16 %v2269
    %v2452 = vunpack.c.h.b16 %v2269
    %v2453 = vunpack.c.l.b16 %v2270
    %v2454 = vunpack.c.h.b16 %v2270
    %v2455 = vunpack.c.l.b16 %v2271
    %v2456 = vunpack.c.h.b16 %v2271
    %v2457 = vunpack.c.l.b16 %v2272
    %v2458 = vunpack.c.h.b16 %v2272
    %v2459 = vunpack.c.l.b16 %v2273
    %v2460 = vunpack.c.h.b16 %v2273
    %v2461 = vunpack.c.l.b16 %v2274
    %v2462 = vunpack.c.h.b16 %v2274
    %v2463 = vunpack.c.l.b16 %v2275
    %v2464 = vunpack.c.h.b16 %v2275
    %v2465 = vunpack.c.l.b16 %v2276
    %v2466 = vunpack.c.h.b16 %v2276
    %v2467 = vunpack.c.l.b16 %v2277
    %v2468 = vunpack.c.h.b16 %v2277
    %v2469 = vunpack.c.l.b16 %v2278
    %v2470 = vunpack.c.h.b16 %v2278
    %v2471 = vunpack.c.l.b16 %v2279
    %v2472 = vunpack.c.h.b16 %v2279
    %v2473 = vunpack.c.l.b16 %v2280
    %v2474 = vunpack.c.h.b16 %v2280
    %v2475 = vunpack.c.l.b16 %v2281
    %v2476 = vunpack.c.h.b16 %v2281
    %v2477 = vunpack.c.l.b16 %v2282
    %v2478 = vunpack.c.h.b16 %v2282
    %v2479 = vunpack.c.l.b16 %v2283
    %v2480 = vunpack.c.h.b16 %v2283
    %v2481 = vunpack.c.l.b16 %v2284
    %v2482 = vunpack.c.h.b16 %v2284
    %v2483 = vunpack.c.l.b16 %v2285
    %v2484 = vunpack.c.h.b16 %v2285
    %v2485 = vunpack.c.l.b16 %v2286
    %v2486 = vunpack.c.h.b16 %v2286
    %v2487 = vunpack.c.l.b16 %v2287
    %v2488 = vunpack.c.h.b16 %v2287
    %v2489 = vunpack.c.l.b16 %v2288
    %v2490 = vunpack.c.h.b16 %v2288
    %v2491 = vunpack.c.l.b16 %v2289
    %v2492 = vunpack.c.h.b16 %v2289
    %v2493 = vunpack.c.l.b16 %v2290
    %v2494 = vunpack.c.h.b16 %v2290
    %v2495 = vpack.c.b16 %v2369, %v2367
    %v2496 = vpack.c.b16 %v2370, %v2368
    %v2497 = vpack.c.b16 %v2373, %v2371
    %v2498 = vpack.c.b16 %v2374, %v2372
    %v2499 = vpack.c.b16 %v2377, %v2375
    %v2500 = vpack.c.b16 %v2378, %v2376
    %v2501 = vpack.c.b16 %v2381, %v2379
    %v2502 = vpack.c.b16 %v2382, %v2380
    %v2503 = vpack.c.b16 %v2385, %v2383
    %v2504 = vpack.c.b16 %v2386, %v2384
    %v2505 = vpack.c.b16 %v2389, %v2387
    %v2506 = vpack.c.b16 %v2390, %v2388
    %v2507 = vpack.c.b16 %v2393, %v2391
    %v2508 = vpack.c.b16 %v2394, %v2392
    %v2509 = vpack.c.b16 %v2397, %v2395
    %v2510 = vpack.c.b16 %v2398, %v2396
    %v2511 = vpack.c.b16 %v2401, %v2399
    %v2512 = vpack.c.b16 %v2402, %v2400
    %v2513 = vpack.c.b16 %v2405, %v2403
    %v2514 = vpack.c.b16 %v2406, %v2404
    %v2515 = vpack.c.b16 %v2409, %v2407
    %v2516 = vpack.c.b16 %v2410, %v2408
    %v2517 = vpack.c.b16 %v2413, %v2411
    %v2518 = vpack.c.b16 %v2414, %v2412
    %v2519 = vpack.c.b16 %v2417, %v2415
    %v2520 = vpack.c.b16 %v2418, %v2416
    %v2521 = vpack.c.b16 %v2421, %v2419
    %v2522 = vpack.c.b16 %v2422, %v2420
    %v2523 = vpack.c.b16 %v2425, %v2423
    %v2524 = vpack.c.b16 %v2426, %v2424
    %v2525 = vpack.c.b16 %v2429, %v2427
    %v2526 = vpack.c.b16 %v2430, %v2428
    %v2527 = vpack.c.b16 %v2433, %v2431
    %v2528 = vpack.c.b16 %v2434, %v2432
    %v2529 = vpack.c.b16 %v2437, %v2435
    %v2530 = vpack.c.b16 %v2438, %v2436
    %v2531 = vpack.c.b16 %v2441, %v2439
    %v2532 = vpack.c.b16 %v2442, %v2440
    %v2533 = vpack.c.b16 %v2445, %v2443
    %v2534 = vpack.c.b16 %v2446, %v2444
    %v2535 = vpack.c.b16 %v2449, %v2447
    %v2536 = vpack.c.b16 %v2450, %v2448
    %v2537 = vpack.c.b16 %v2453, %v2451
    %v2538 = vpack.c.b16 %v2454, %v2452
    %v2539 = vpack.c.b16 %v2457, %v2455
    %v2540 = vpack.c.b16 %v2458, %v2456
    %v2541 = vpack.c.b16 %v2461, %v2459
    %v2542 = vpack.c.b16 %v2462, %v2460
    %v2543 = vpack.c.b16 %v2465, %v2463
    %v2544 = vpack.c.b16 %v2466, %v2464
    %v2545 = vpack.c.b16 %v2469, %v2467
    %v2546 = vpack.c.b16 %v2470, %v2468
    %v2547 = vpack.c.b16 %v2473, %v2471
    %v2548 = vpack.c.b16 %v2474, %v2472
    %v2549 = vpack.c.b16 %v2477, %v2475
    %v2550 = vpack.c.b16 %v2478, %v2476
    %v2551 = vpack.c.b16 %v2481, %v2479
    %v2552 = vpack.c.b16 %v2482, %v2480
    %v2553 = vpack.c.b16 %v2485, %v2483
    %v2554 = vpack.c.b16 %v2486, %v2484
    %v2555 = vpack.c.b16 %v2489, %v2487
    %v2556 = vpack.c.b16 %v2490, %v2488
    %v2557 = vpack.c.b16 %v2493, %v2491
    %v2558 = vpack.c.b16 %v2494, %v2492
    %2623 = vmatprep.subr.bf16.mxu0 %v2496
    %2624 = vmatpush1.bf16.msra.mxu0 %v2495
    %2625 = vmatprep.subr.bf16.mxu0 %v2498
    %2626 = vmatpush1.bf16.msra.mxu0 %v2497
    %2627 = vmatprep.subr.bf16.mxu0 %v2500
    %2628 = vmatpush1.bf16.msra.mxu0 %v2499
    %2629 = vmatprep.subr.bf16.mxu0 %v2502
    %2630 = vmatpush1.bf16.msra.mxu0 %v2501
    %2631 = vmatprep.subr.bf16.mxu0 %v2504
    %2632 = vmatpush1.bf16.msra.mxu0 %v2503
    %2633 = vmatprep.subr.bf16.mxu0 %v2506
    %2634 = vmatpush1.bf16.msra.mxu0 %v2505
    %2635 = vmatprep.subr.bf16.mxu0 %v2508
    %2636 = vmatpush1.bf16.msra.mxu0 %v2507
    %2637 = vmatprep.subr.bf16.mxu0 %v2510
    %2638 = vmatpush1.bf16.msra.mxu0 %v2509
    %2639 = vmatprep.subr.bf16.mxu0 %v2512
    %2640 = vmatpush1.bf16.msra.mxu0 %v2511
    %2641 = vmatprep.subr.bf16.mxu0 %v2514
    %2642 = vmatpush1.bf16.msra.mxu0 %v2513
    %2643 = vmatprep.subr.bf16.mxu0 %v2516
    %2644 = vmatpush1.bf16.msra.mxu0 %v2515
    %2645 = vmatprep.subr.bf16.mxu0 %v2518
    %2646 = vmatpush1.bf16.msra.mxu0 %v2517
    %2647 = vmatprep.subr.bf16.mxu0 %v2520
    %2648 = vmatpush1.bf16.msra.mxu0 %v2519
    %2649 = vmatprep.subr.bf16.mxu0 %v2522
    %2650 = vmatpush1.bf16.msra.mxu0 %v2521
    %2651 = vmatprep.subr.bf16.mxu0 %v2524
    %2652 = vmatpush1.bf16.msra.mxu0 %v2523
    %2653 = vmatprep.subr.bf16.mxu0 %v2526
    %2654 = vmatpush1.bf16.msra.mxu0 %v2525
    %2655 = vmatprep.mubr.bf16.mxu0 %v2224
    %2656 = vmatmul.mubr.bf16.gmra.mrb[0].mxu0 %v2223
    %v2657 = vpop.f32.mrb[0].mxu0
    %v2658 = vadd.f32 %v2296, %v2657
    %v2659 = vpop.f32.mrb[0].mxu0
    %v2660 = vadd.f32 %v2300, %v2659
    %v2661 = vpop.f32.mrb[0].mxu0
    %v2662 = vpop.f32.mrb[0].mxu0
    %2663 = vdwg.mxu0
    %2664 = vmatprep.subr.bf16.mxu0 %v2528
    %2665 = vmatpush1.bf16.msra.mxu0 %v2527
    %2666 = vmatprep.subr.bf16.mxu0 %v2530
    %2667 = vmatpush1.bf16.msra.mxu0 %v2529
    %2668 = vmatprep.subr.bf16.mxu0 %v2532
    %2669 = vmatpush1.bf16.msra.mxu0 %v2531
    %2670 = vmatprep.subr.bf16.mxu0 %v2534
    %2671 = vmatpush1.bf16.msra.mxu0 %v2533
    %2672 = vmatprep.subr.bf16.mxu0 %v2536
    %2673 = vmatpush1.bf16.msra.mxu0 %v2535
    %2674 = vmatprep.subr.bf16.mxu0 %v2538
    %2675 = vmatpush1.bf16.msra.mxu0 %v2537
    %2676 = vmatprep.subr.bf16.mxu0 %v2540
    %2677 = vmatpush1.bf16.msra.mxu0 %v2539
    %2678 = vmatprep.subr.bf16.mxu0 %v2542
    %2679 = vmatpush1.bf16.msra.mxu0 %v2541
    %2680 = vmatprep.subr.bf16.mxu0 %v2544
    %2681 = vmatpush1.bf16.msra.mxu0 %v2543
    %2682 = vmatprep.subr.bf16.mxu0 %v2546
    %2683 = vmatpush1.bf16.msra.mxu0 %v2545
    %2684 = vmatprep.subr.bf16.mxu0 %v2548
    %2685 = vmatpush1.bf16.msra.mxu0 %v2547
    %2686 = vmatprep.subr.bf16.mxu0 %v2550
    %2687 = vmatpush1.bf16.msra.mxu0 %v2549
    %2688 = vmatprep.subr.bf16.mxu0 %v2552
    %2689 = vmatpush1.bf16.msra.mxu0 %v2551
    %2690 = vmatprep.subr.bf16.mxu0 %v2554
    %2691 = vmatpush1.bf16.msra.mxu0 %v2553
    %2692 = vmatprep.subr.bf16.mxu0 %v2556
    %2693 = vmatpush1.bf16.msra.mxu0 %v2555
    %2694 = vmatprep.subr.bf16.mxu0 %v2558
    %2695 = vmatpush1.bf16.msra.mxu0 %v2557
    %2696 = vmatprep.mubr.bf16.mxu0 %v2226
    %2697 = vmatmul.mubr.bf16.gmra.mrb[0].mxu0 %v2225
    %v2698 = vpop.f32.mrb[0].mxu0
    %v2699 = vadd.f32 %v2658, %v2698
    %v2700 = vpop.f32.mrb[0].mxu0
    %v2701 = vadd.f32 %v2660, %v2700
    %v2702 = vpop.f32.mrb[0].mxu0
    %v2703 = vpop.f32.mrb[0].mxu0
    %2704 = vdwg.mxu0
    %v2705 = vmax.f32 %v2699, 0.0
    %v2706 = vmax.f32 %v2701, 0.0
    %v2707 = vpack.c.bf16 %v2705, %v2705
    %v2708 = vpack.c.bf16 %v2706, %v2706
    %v2709 = vld [vmem:[%s11] sm:$0xf]
    %v2710 = vld [vmem:[%s11 + $0x4] sm:$0xf]
    %v2711 = vld [vmem:[%s11 + $0x8] sm:$0xf]
    %v2712 = vld [vmem:[%s11 + $0xc] sm:$0xf]
    %v2713 = vld [vmem:[%s11 + $0x10] sm:$0xf]
    %v2714 = vld [vmem:[%s11 + $0x14] sm:$0xf]
    %v2715 = vld [vmem:[%s11 + $0x18] sm:$0xf]
    %v2716 = vld [vmem:[%s11 + $0x1c] sm:$0xf]
    %v2717 = vld [vmem:[%s11 + $0x20] sm:$0xf]
    %v2718 = vld [vmem:[%s11 + $0x24] sm:$0xf]
    %v2719 = vld [vmem:[%s11 + $0x28] sm:$0xf]
    %v2720 = vld [vmem:[%s11 + $0x2c] sm:$0xf]
    %v2721 = vld [vmem:[%s11 + $0x30] sm:$0xf]
    %v2722 = vld [vmem:[%s11 + $0x34] sm:$0xf]
    %v2723 = vld [vmem:[%s11 + $0x38] sm:$0xf]
    %v2724 = vld [vmem:[%s11 + $0x3c] sm:$0xf]
    %v2725 = vld [vmem:[%s11 + $0x40] sm:$0xf]
    %v2726 = vld [vmem:[%s11 + $0x44] sm:$0xf]
    %v2727 = vld [vmem:[%s11 + $0x48] sm:$0xf]
    %v2728 = vld [vmem:[%s11 + $0x4c] sm:$0xf]
    %v2729 = vld [vmem:[%s11 + $0x50] sm:$0xf]
    %v2730 = vld [vmem:[%s11 + $0x54] sm:$0xf]
    %v2731 = vld [vmem:[%s11 + $0x58] sm:$0xf]
    %v2732 = vld [vmem:[%s11 + $0x5c] sm:$0xf]
    %v2733 = vld [vmem:[%s11 + $0x60] sm:$0xf]
    %v2734 = vld [vmem:[%s11 + $0x64] sm:$0xf]
    %v2735 = vld [vmem:[%s11 + $0x68] sm:$0xf]
    %v2736 = vld [vmem:[%s11 + $0x6c] sm:$0xf]
    %v2737 = vld [vmem:[%s11 + $0x70] sm:$0xf]
    %v2738 = vld [vmem:[%s11 + $0x74] sm:$0xf]
    %v2739 = vld [vmem:[%s11 + $0x78] sm:$0xf]
    %v2740 = vld [vmem:[%s11 + $0x7c] sm:$0xf]
    %v2741 = vld [vmem:[%s12] sm:$0x1]
    %v2743 = vlaneseq
    %v2744 = vshrl.u32 %v2743, 7
    %v2745 = vsub.s32 0, %v2744
    %v2746 = vrot.slane %v2741, %v2745
    %v2780 = vunpack.c.l.b16 %v2709
    %v2781 = vunpack.c.l.b16 %v2710
    %v2782 = vunpack.c.l.b16 %v2711
    %v2783 = vunpack.c.l.b16 %v2712
    %v2784 = vunpack.c.l.b16 %v2713
    %v2785 = vunpack.c.l.b16 %v2714
    %v2786 = vunpack.c.l.b16 %v2715
    %v2787 = vunpack.c.l.b16 %v2716
    %v2788 = vunpack.c.l.b16 %v2717
    %v2789 = vunpack.c.l.b16 %v2718
    %v2790 = vunpack.c.l.b16 %v2719
    %v2791 = vunpack.c.l.b16 %v2720
    %v2792 = vunpack.c.l.b16 %v2721
    %v2793 = vunpack.c.l.b16 %v2722
    %v2794 = vunpack.c.l.b16 %v2723
    %v2795 = vunpack.c.l.b16 %v2724
    %v2796 = vunpack.c.l.b16 %v2725
    %v2797 = vunpack.c.l.b16 %v2726
    %v2798 = vunpack.c.l.b16 %v2727
    %v2799 = vunpack.c.l.b16 %v2728
    %v2800 = vunpack.c.l.b16 %v2729
    %v2801 = vunpack.c.l.b16 %v2730
    %v2802 = vunpack.c.l.b16 %v2731
    %v2803 = vunpack.c.l.b16 %v2732
    %v2804 = vunpack.c.l.b16 %v2733
    %v2805 = vunpack.c.l.b16 %v2734
    %v2806 = vunpack.c.l.b16 %v2735
    %v2807 = vunpack.c.l.b16 %v2736
    %v2808 = vunpack.c.l.b16 %v2737
    %v2809 = vunpack.c.l.b16 %v2738
    %v2810 = vunpack.c.l.b16 %v2739
    %v2811 = vunpack.c.l.b16 %v2740
    %v2812 = vpack.c.b16 %v2781, %v2780
    %v2813 = vpack.c.b16 %v2783, %v2782
    %v2814 = vpack.c.b16 %v2785, %v2784
    %v2815 = vpack.c.b16 %v2787, %v2786
    %v2816 = vpack.c.b16 %v2789, %v2788
    %v2817 = vpack.c.b16 %v2791, %v2790
    %v2818 = vpack.c.b16 %v2793, %v2792
    %v2819 = vpack.c.b16 %v2795, %v2794
    %v2820 = vpack.c.b16 %v2797, %v2796
    %v2821 = vpack.c.b16 %v2799, %v2798
    %v2822 = vpack.c.b16 %v2801, %v2800
    %v2823 = vpack.c.b16 %v2803, %v2802
    %v2824 = vpack.c.b16 %v2805, %v2804
    %v2825 = vpack.c.b16 %v2807, %v2806
    %v2826 = vpack.c.b16 %v2809, %v2808
    %v2827 = vpack.c.b16 %v2811, %v2810
    %2844 = vmatprep.subr.bf16.mxu0 0
    %2845 = vmatpush1.bf16.msra.mxu0 %v2812
    %2846 = vmatprep.subr.bf16.mxu0 0
    %2847 = vmatpush1.bf16.msra.mxu0 %v2813
    %2848 = vmatprep.subr.bf16.mxu0 0
    %2849 = vmatpush1.bf16.msra.mxu0 %v2814
    %2850 = vmatprep.subr.bf16.mxu0 0
    %2851 = vmatpush1.bf16.msra.mxu0 %v2815
    %2852 = vmatprep.subr.bf16.mxu0 0
    %2853 = vmatpush1.bf16.msra.mxu0 %v2816
    %2854 = vmatprep.subr.bf16.mxu0 0
    %2855 = vmatpush1.bf16.msra.mxu0 %v2817
    %2856 = vmatprep.subr.bf16.mxu0 0
    %2857 = vmatpush1.bf16.msra.mxu0 %v2818
    %2858 = vmatprep.subr.bf16.mxu0 0
    %2859 = vmatpush1.bf16.msra.mxu0 %v2819
    %2860 = vmatprep.subr.bf16.mxu0 0
    %2861 = vmatpush1.bf16.msra.mxu0 %v2820
    %2862 = vmatprep.subr.bf16.mxu0 0
    %2863 = vmatpush1.bf16.msra.mxu0 %v2821
    %2864 = vmatprep.subr.bf16.mxu0 0
    %2865 = vmatpush1.bf16.msra.mxu0 %v2822
    %2866 = vmatprep.subr.bf16.mxu0 0
    %2867 = vmatpush1.bf16.msra.mxu0 %v2823
    %2868 = vmatprep.subr.bf16.mxu0 0
    %2869 = vmatpush1.bf16.msra.mxu0 %v2824
    %2870 = vmatprep.subr.bf16.mxu0 0
    %2871 = vmatpush1.bf16.msra.mxu0 %v2825
    %2872 = vmatprep.subr.bf16.mxu0 0
    %2873 = vmatpush1.bf16.msra.mxu0 %v2826
    %2874 = vmatprep.subr.bf16.mxu0 0
    %2875 = vmatpush1.bf16.msra.mxu0 %v2827
    %2876 = vmatprep.mubr.bf16.mxu0 %v2708
    %2877 = vmatmul.mubr.bf16.gmra.mrb[0].mxu0 %v2707
    %v2878 = vpop.f32.mrb[0].mxu0
    %v2879 = vadd.f32 %v2746, %v2878
    %v2880 = vpop.f32.mrb[0].mxu0
    %v2881 = vpop.f32.mrb[0].mxu0
    %v2882 = vpop.f32.mrb[0].mxu0
    %2883 = vdwg.mxu0
    %v2884 = vtanh.pop %v2879
    %v2885 = vmul.f32 %v2884, 2.0
    %vm2886 = vcmask 64512
    %2887 = vst.msk [vmem:[#allocation10] sm:$0xff] %vm2886, %v2885
    // Predicated region
    $region70: #{tpu_custom_call.1} parent=1 // pred_check
      _
    $region71: #{tpu_custom_call.1} parent=1 // pred_check_branch
      %2889 = sbr.rel (0) target = $region73
    $region72: #{tpu_custom_call.1} parent=1 // pred_region
      %s2891 = ssub.s32 128, 128
      %2892 = vsyncadd [#allocation4], %s2891
      %s2894 = sshll.u32 [#allocation10], 4
      %s2895 = int_to_ptr.vmem [resolvable:$true] %s2894
      %2897 = dma.vmem_to_hbm [thread:$0]  %s2895, 128, %s13, [#allocation4]
    $region73: #{tpu_custom_call.1} parent=1 // pred_fallthru
      _
    // Predicated region
    $region74: #{tpu_custom_call.1} parent=1 // pred_check
      _
    $region75: #{tpu_custom_call.1} parent=1 // pred_check_branch
      %2899 = sbr.rel (0) target = $region77
    $region76: #{tpu_custom_call.1} parent=1 // pred_region
      %2900 = dma.done [#allocation4], 128
    $region77: #{tpu_custom_call.1} parent=1 // pred_fallthru
      _
    %2901 = vsyncpa [#allocation3], 1
    %2902 = vsyncpa [#allocation6], 1
    %2903 = vsyncpa [#allocation9], 1
    %2904 = vsyncpa [#allocation4], 1

</llo_original>
